<compile_context>
chip_gen: v7x
topology: tpu7x:2x2x1
jax: 0.10.0
libtpu: 0.0.40
codegen_flags: <defaults>
</compile_context>

<pallas_src>
import functools

import jax
import jax.numpy as jnp
from jax.experimental import pallas as pl
from jax.experimental.pallas import tpu as pltpu


def _round_up(x, m):
    return ((x + m - 1) // m) * m


def _row_tile(n_padded):
    # Pick a row tile that (a) divides the 128-padded row count and (b) gives
    # at least two tiles whenever possible so the "parallel" grid axis can be
    # split across v7x's two TensorCores.
    if n_padded >= 256:
        return 128
    return 64  # n_padded == 128 -> two 64-row tiles (sublane multiple of 8).


# --------------------------------------------------------------------------
# Phase 1: XW = x @ W1   (feature transform, done exactly once)
# --------------------------------------------------------------------------
def transform_kernel(x_ref, w_ref, xw_ref):
    xw_ref[...] = jnp.dot(
        x_ref[...], w_ref[...], preferred_element_type=jnp.float32
    ).astype(xw_ref.dtype)


# --------------------------------------------------------------------------
# Phase 2: HW = relu(adj0_rows @ XW + b1) @ W2
#   (layer-1 propagation fused with the layer-2 feature transform; h1 stays
#    in vregs/VMEM and never hits HBM)
# --------------------------------------------------------------------------
def layer1_kernel(adj0_ref, xw_ref, b1_ref, w2_ref, hw_ref):
    h = jnp.dot(adj0_ref[...], xw_ref[...], preferred_element_type=jnp.float32)
    h = jnp.maximum(h + b1_ref[...], 0.0).astype(adj0_ref.dtype)  # bf16 h1 tile
    hw_ref[...] = jnp.dot(
        h, w2_ref[...], preferred_element_type=jnp.float32
    ).astype(hw_ref.dtype)


# --------------------------------------------------------------------------
# Phase 3: out = log_softmax(adj1_rows @ HW + b2, axis=1)
# --------------------------------------------------------------------------
def layer2_kernel(adj1_ref, hw_ref, b2_ref, out_ref, *, nclass):
    logits = jnp.dot(
        adj1_ref[...], hw_ref[...], preferred_element_type=jnp.float32
    ) + b2_ref[...]
    # Padded class columns must not participate in the softmax.
    col = jax.lax.broadcasted_iota(jnp.int32, logits.shape, 1)
    logits = jnp.where(col < nclass, logits, jnp.float32(-1e30))
    m = jnp.max(logits, axis=1, keepdims=True)
    shifted = logits - m
    lse = jnp.log(jnp.sum(jnp.exp(shifted), axis=1, keepdims=True))
    out_ref[...] = (shifted - lse).astype(out_ref.dtype)


# --------------------------------------------------------------------------
# Wrapper: pad to lane-dense shapes (rows to 128, features to 128), run the
# three phased kernels, slice the valid output back out.
# --------------------------------------------------------------------------
def gcn_forward(x, adj0, adj1, w1, b1, w2, b2):
    N0, F = x.shape
    N1 = adj0.shape[0]
    N2 = adj1.shape[0]
    H = w1.shape[1]
    C = w2.shape[1]

    Fp = _round_up(F, 128)
    Hp = _round_up(H, 128)
    Cp = _round_up(C, 128)
    # Rows padded only to the 128 lane/MXU minimum (not to the row tile).
    N0p = _round_up(N0, 128)
    N1p = _round_up(N1, 128)
    N2p = _round_up(N2, 128)

    bf16 = jnp.bfloat16
    f32 = jnp.float32

    # bf16 MXU operands (f32 accumulation inside the kernels), zero padding.
    x_p = jnp.zeros((N0p, Fp), bf16).at[:N0, :F].set(x.astype(bf16))
    adj0_p = jnp.zeros((N1p, N0p), bf16).at[:N1, :N0].set(adj0.astype(bf16))
    adj1_p = jnp.zeros((N2p, N1p), bf16).at[:N2, :N1].set(adj1.astype(bf16))
    w1_p = jnp.zeros((Fp, Hp), bf16).at[:F, :H].set(w1.astype(bf16))
    w2_p = jnp.zeros((Hp, Cp), bf16).at[:H, :C].set(w2.astype(bf16))
    b1_p = jnp.zeros((1, Hp), f32).at[:, :H].set(
        jnp.reshape(b1, (1, H)).astype(f32))
    b2_p = jnp.zeros((1, Cp), f32).at[:, :C].set(
        jnp.reshape(b2, (1, C)).astype(f32))

    compiler_params = pltpu.CompilerParams(
        dimension_semantics=("parallel",),
        vmem_limit_bytes=32 * 1024 * 1024,
    )

    # ---- Phase 1: XW = x @ W1 ----
    tm0 = _row_tile(N0p)
    cost1 = pl.CostEstimate(
        flops=int(2 * N0p * Fp * Hp),
        transcendentals=0,
        bytes_accessed=int(2 * (N0p * Fp + (N0p // tm0) * Fp * Hp + N0p * Hp)),
    )
    xw = pl.pallas_call(
        transform_kernel,
        out_shape=jax.ShapeDtypeStruct((N0p, Hp), bf16),
        grid=(N0p // tm0,),
        in_specs=[
            pl.BlockSpec((tm0, Fp), lambda i: (i, 0)),   # x row tile
            pl.BlockSpec((Fp, Hp), lambda i: (0, 0)),    # W1 (constant block)
        ],
        out_specs=pl.BlockSpec((tm0, Hp), lambda i: (i, 0)),
        compiler_params=compiler_params,
        cost_estimate=cost1,
    )(x_p, w1_p)

    # ---- Phase 2: HW = relu(adj0 @ XW + b1) @ W2 ----
    tm1 = _row_tile(N1p)
    g1 = N1p // tm1
    cost2 = pl.CostEstimate(
        flops=int(2 * N1p * N0p * Hp + 2 * N1p * Hp * Cp),
        transcendentals=0,
        bytes_accessed=int(2 * (N1p * N0p + g1 * (N0p * Hp + Hp * Cp) + N1p * Cp)
                           + 4 * g1 * Hp),
    )
    hw = pl.pallas_call(
        layer1_kernel,
        out_shape=jax.ShapeDtypeStruct((N1p, Cp), bf16),
        grid=(g1,),
        in_specs=[
            pl.BlockSpec((tm1, N0p), lambda i: (i, 0)),  # adj0 row tile, full K
            pl.BlockSpec((N0p, Hp), lambda i: (0, 0)),   # XW (constant block)
            pl.BlockSpec((1, Hp), lambda i: (0, 0)),     # b1
            pl.BlockSpec((Hp, Cp), lambda i: (0, 0)),    # W2
        ],
        out_specs=pl.BlockSpec((tm1, Cp), lambda i: (i, 0)),
        compiler_params=compiler_params,
        cost_estimate=cost2,
    )(adj0_p, xw, b1_p, w2_p)

    # ---- Phase 3: out = log_softmax(adj1 @ HW + b2) ----
    tm2 = _row_tile(N2p)
    g2 = N2p // tm2
    cost3 = pl.CostEstimate(
        flops=int(2 * N2p * N1p * Cp + 6 * N2p * Cp),
        transcendentals=int(N2p * Cp + N2p),
        bytes_accessed=int(2 * (N2p * N1p + g2 * N1p * Cp)
                           + 4 * (g2 * Cp + N2p * Cp)),
    )
    out_p = pl.pallas_call(
        functools.partial(layer2_kernel, nclass=C),
        out_shape=jax.ShapeDtypeStruct((N2p, Cp), f32),
        grid=(g2,),
        in_specs=[
            pl.BlockSpec((tm2, N1p), lambda i: (i, 0)),  # adj1 row tile, full K
            pl.BlockSpec((N1p, Cp), lambda i: (0, 0)),   # HW (constant block)
            pl.BlockSpec((1, Cp), lambda i: (0, 0)),     # b2
        ],
        out_specs=pl.BlockSpec((tm2, Cp), lambda i: (i, 0)),
        compiler_params=compiler_params,
        cost_estimate=cost3,
    )(adj1_p, hw, b2_p)

    return out_p[:N2, :C]


def reference_forward(x, adj0, adj1, w1, b1, w2, b2):
    h1 = jnp.maximum(adj0 @ (x @ w1) + b1, 0.0)
    logits = adj1 @ (h1 @ w2) + b2
    return jax.nn.log_softmax(logits, axis=1)


if __name__ == "__main__":
    # Small but non-trivial shapes (exercise padding + multi-tile grids):
    #   nfeat=130, nhid=48, nclass=7
    #   layer-0 nodes N0=600, layer-1 sampled nodes N1=300, output nodes N2=120
    nfeat, nhid, nclass = 130, 48, 7
    n0, n1, n2 = 600, 300, 120

    key = jax.random.PRNGKey(0)
    kx, ka0, ka1, kw1, kb1, kw2, kb2 = jax.random.split(key, 7)

    x = jax.random.normal(kx, (n0, nfeat), dtype=jnp.float32)
    # dense (row-normalized-ish) adjacency blocks as FastGCN samples them
    adj0 = jax.random.uniform(ka0, (n1, n0), dtype=jnp.float32) / n0
    adj1 = jax.random.uniform(ka1, (n2, n1), dtype=jnp.float32) / n1

    # GraphConvolution params: weight (in, out), bias (out,)
    w1 = jax.random.normal(kw1, (nfeat, nhid), dtype=jnp.float32) * 0.1
    b1 = jax.random.normal(kb1, (nhid,), dtype=jnp.float32) * 0.1
    w2 = jax.random.normal(kw2, (nhid, nclass), dtype=jnp.float32) * 0.1
    b2 = jax.random.normal(kb2, (nclass,), dtype=jnp.float32) * 0.1

    fwd = jax.jit(gcn_forward)
    out = fwd(x, adj0, adj1, w1, b1, w2, b2)
    out = jax.block_until_ready(out)

    ref = reference_forward(x, adj0, adj1, w1, b1, w2, b2)
    assert out.shape == (n2, nclass), out.shape
    # bf16 MXU inputs with f32 accumulation -> loosened tolerance vs f32 ref.
    assert jnp.allclose(out, ref, atol=2e-2, rtol=2e-2), float(
        jnp.max(jnp.abs(out - ref)))

    print("KERNEL_OK")
</pallas_src>

<mosaic_0001>
module attributes {stable_mosaic.version = 11 : i64} {
  func.func @transform_kernel(%arg0: i32, %arg1: memref<128x256xbf16, #tpu.memory_space<vmem>>, %arg2: memref<256x128xbf16, #tpu.memory_space<vmem>>, %arg3: memref<128x128xbf16, #tpu.memory_space<vmem>>) attributes {dimension_semantics = [#tpu.dimension_semantics<parallel>], iteration_bounds = array<i64: 5>, scalar_prefetch = 0 : i64, scratch_operands = 0 : i64, tpu.core_type = #tpu.core_type<tc>, window_params = [{transform_indices = @transform_0, window_bounds = array<i64: 128, 256>}, {pipeline_mode = #tpu.pipeline_mode<synchronous>, transform_indices = @transform_1, window_bounds = array<i64: 256, 128>}, {transform_indices = @transform_2, window_bounds = array<i64: 128, 128>}]} {
    %c0 = arith.constant 0 : index
    %c0_0 = arith.constant 0 : index
    %0 = vector.load %arg1[%c0, %c0_0] : memref<128x256xbf16, #tpu.memory_space<vmem>>, vector<128x256xbf16>
    %c0_1 = arith.constant 0 : index
    %c0_2 = arith.constant 0 : index
    %1 = vector.load %arg2[%c0_1, %c0_2] : memref<256x128xbf16, #tpu.memory_space<vmem>>, vector<256x128xbf16>
    %cst = arith.constant dense<0.000000e+00> : vector<128x128xf32>
    %2 = tpu.matmul %0, %1, %cst {dimension_numbers = #tpu.dot_dimension_numbers<[1], [0], [0], [1], [0, 0, 1, 1], [], []>} : vector<128x256xbf16>, vector<256x128xbf16>, vector<128x128xf32> -> vector<128x128xf32>
    %3 = arith.truncf %2 : vector<128x128xf32> to vector<128x128xbf16>
    %c0_3 = arith.constant 0 : index
    %c0_4 = arith.constant 0 : index
    %4 = vector.load %arg3[%c0_3, %c0_4] : memref<128x128xbf16, #tpu.memory_space<vmem>>, vector<128x128xbf16>
    tpu.vector_store %arg3[%c0_3, %c0_4], %3 {strides = array<i32>} : memref<128x128xbf16, #tpu.memory_space<vmem>>, vector<128x128xbf16>,
    return
  }
  func.func @transform_0(%arg0: i32) -> (i32, i32) {
    %c0_i32 = arith.constant 0 : i32
    %c0_i32_0 = arith.constant 0 : i32
    return %arg0, %c0_i32 : i32, i32
  }
  func.func @transform_1(%arg0: i32) -> (i32, i32) {
    %c0_i32 = arith.constant 0 : i32
    %c0_i32_0 = arith.constant 0 : i32
    %c0_i32_1 = arith.constant 0 : i32
    return %c0_i32, %c0_i32_0 : i32, i32
  }
  func.func @transform_2(%arg0: i32) -> (i32, i32) {
    %c0_i32 = arith.constant 0 : i32
    %c0_i32_0 = arith.constant 0 : i32
    return %arg0, %c0_i32 : i32, i32
  }
}

module attributes {stable_mosaic.version = 11 : i64} {
  func.func @layer1_kernel(%arg0: i32, %arg1: memref<128x640xbf16, #tpu.memory_space<vmem>>, %arg2: memref<640x128xbf16, #tpu.memory_space<vmem>>, %arg3: memref<1x128xf32, #tpu.memory_space<vmem>>, %arg4: memref<128x128xbf16, #tpu.memory_space<vmem>>, %arg5: memref<128x128xbf16, #tpu.memory_space<vmem>>) attributes {dimension_semantics = [#tpu.dimension_semantics<parallel>], iteration_bounds = array<i64: 3>, scalar_prefetch = 0 : i64, scratch_operands = 0 : i64, tpu.core_type = #tpu.core_type<tc>, window_params = [{transform_indices = @transform_0, window_bounds = array<i64: 128, 640>}, {pipeline_mode = #tpu.pipeline_mode<synchronous>, transform_indices = @transform_1, window_bounds = array<i64: 640, 128>}, {pipeline_mode = #tpu.pipeline_mode<synchronous>, transform_indices = @transform_2, window_bounds = array<i64: 1, 128>}, {pipeline_mode = #tpu.pipeline_mode<synchronous>, transform_indices = @transform_3, window_bounds = array<i64: 128, 128>}, {transform_indices = @transform_4, window_bounds = array<i64: 128, 128>}]} {
    %c0 = arith.constant 0 : index
    %c0_0 = arith.constant 0 : index
    %0 = vector.load %arg1[%c0, %c0_0] : memref<128x640xbf16, #tpu.memory_space<vmem>>, vector<128x640xbf16>
    %c0_1 = arith.constant 0 : index
    %c0_2 = arith.constant 0 : index
    %1 = vector.load %arg2[%c0_1, %c0_2] : memref<640x128xbf16, #tpu.memory_space<vmem>>, vector<640x128xbf16>
    %cst = arith.constant dense<0.000000e+00> : vector<128x128xf32>
    %2 = tpu.matmul %0, %1, %cst {dimension_numbers = #tpu.dot_dimension_numbers<[1], [0], [0], [1], [0, 0, 1, 1], [], []>} : vector<128x640xbf16>, vector<640x128xbf16>, vector<128x128xf32> -> vector<128x128xf32>
    %c0_3 = arith.constant 0 : index
    %c0_4 = arith.constant 0 : index
    %3 = vector.load %arg3[%c0_3, %c0_4] : memref<1x128xf32, #tpu.memory_space<vmem>>, vector<1x128xf32>
    %4 = vector.broadcast %3 : vector<1x128xf32> to vector<128x128xf32>
    %5 = arith.addf %2, %4 : vector<128x128xf32>
    %cst_5 = arith.constant 0.000000e+00 : f32
    %6 = vector.broadcast %cst_5 : f32 to vector<128x128xf32>
    %7 = arith.maximumf %5, %6 : vector<128x128xf32>
    %8 = arith.truncf %7 : vector<128x128xf32> to vector<128x128xbf16>
    %c0_6 = arith.constant 0 : index
    %c0_7 = arith.constant 0 : index
    %9 = vector.load %arg4[%c0_6, %c0_7] : memref<128x128xbf16, #tpu.memory_space<vmem>>, vector<128x128xbf16>
    %cst_8 = arith.constant dense<0.000000e+00> : vector<128x128xf32>
    %10 = tpu.matmul %8, %9, %cst_8 {dimension_numbers = #tpu.dot_dimension_numbers<[1], [0], [0], [1], [0, 0, 1, 1], [], []>} : vector<128x128xbf16>, vector<128x128xbf16>, vector<128x128xf32> -> vector<128x128xf32>
    %11 = arith.truncf %10 : vector<128x128xf32> to vector<128x128xbf16>
    %c0_9 = arith.constant 0 : index
    %c0_10 = arith.constant 0 : index
    %12 = vector.load %arg5[%c0_9, %c0_10] : memref<128x128xbf16, #tpu.memory_space<vmem>>, vector<128x128xbf16>
    tpu.vector_store %arg5[%c0_9, %c0_10], %11 {strides = array<i32>} : memref<128x128xbf16, #tpu.memory_space<vmem>>, vector<128x128xbf16>,
    return
  }
  func.func @transform_0(%arg0: i32) -> (i32, i32) {
    %c0_i32 = arith.constant 0 : i32
    %c0_i32_0 = arith.constant 0 : i32
    return %arg0, %c0_i32 : i32, i32
  }
  func.func @transform_1(%arg0: i32) -> (i32, i32) {
    %c0_i32 = arith.constant 0 : i32
    %c0_i32_0 = arith.constant 0 : i32
    %c0_i32_1 = arith.constant 0 : i32
    return %c0_i32, %c0_i32_0 : i32, i32
  }
  func.func @transform_2(%arg0: i32) -> (i32, i32) {
    %c0_i32 = arith.constant 0 : i32
    %c0_i32_0 = arith.constant 0 : i32
    %c0_i32_1 = arith.constant 0 : i32
    return %c0_i32, %c0_i32_0 : i32, i32
  }
  func.func @transform_3(%arg0: i32) -> (i32, i32) {
    %c0_i32 = arith.constant 0 : i32
    %c0_i32_0 = arith.constant 0 : i32
    %c0_i32_1 = arith.constant 0 : i32
    return %c0_i32, %c0_i32_0 : i32, i32
  }
  func.func @transform_4(%arg0: i32) -> (i32, i32) {
    %c0_i32 = arith.constant 0 : i32
    %c0_i32_0 = arith.constant 0 : i32
    return %arg0, %c0_i32 : i32, i32
  }
}

module attributes {stable_mosaic.version = 11 : i64} {
  func.func @layer2_kernel(%arg0: i32, %arg1: memref<64x384xbf16, #tpu.memory_space<vmem>>, %arg2: memref<384x128xbf16, #tpu.memory_space<vmem>>, %arg3: memref<1x128xf32, #tpu.memory_space<vmem>>, %arg4: memref<64x128xf32, #tpu.memory_space<vmem>>) attributes {dimension_semantics = [#tpu.dimension_semantics<parallel>], iteration_bounds = array<i64: 2>, scalar_prefetch = 0 : i64, scratch_operands = 0 : i64, tpu.core_type = #tpu.core_type<tc>, window_params = [{transform_indices = @transform_0, window_bounds = array<i64: 64, 384>}, {pipeline_mode = #tpu.pipeline_mode<synchronous>, transform_indices = @transform_1, window_bounds = array<i64: 384, 128>}, {pipeline_mode = #tpu.pipeline_mode<synchronous>, transform_indices = @transform_2, window_bounds = array<i64: 1, 128>}, {transform_indices = @transform_3, window_bounds = array<i64: 64, 128>}]} {
    %c0 = arith.constant 0 : index
    %c0_0 = arith.constant 0 : index
    %0 = vector.load %arg1[%c0, %c0_0] : memref<64x384xbf16, #tpu.memory_space<vmem>>, vector<64x384xbf16>
    %c0_1 = arith.constant 0 : index
    %c0_2 = arith.constant 0 : index
    %1 = vector.load %arg2[%c0_1, %c0_2] : memref<384x128xbf16, #tpu.memory_space<vmem>>, vector<384x128xbf16>
    %cst = arith.constant dense<0.000000e+00> : vector<64x128xf32>
    %2 = tpu.matmul %0, %1, %cst {dimension_numbers = #tpu.dot_dimension_numbers<[1], [0], [0], [1], [0, 0, 1, 1], [], []>} : vector<64x384xbf16>, vector<384x128xbf16>, vector<64x128xf32> -> vector<64x128xf32>
    %c0_3 = arith.constant 0 : index
    %c0_4 = arith.constant 0 : index
    %3 = vector.load %arg3[%c0_3, %c0_4] : memref<1x128xf32, #tpu.memory_space<vmem>>, vector<1x128xf32>
    %4 = vector.broadcast %3 : vector<1x128xf32> to vector<64x128xf32>
    %5 = arith.addf %2, %4 : vector<64x128xf32>
    %6 = tpu.iota {dimensions = array<i32: 1>} : vector<64x128xi32>
    %c7_i32 = arith.constant 7 : i32
    %7 = vector.broadcast %c7_i32 : i32 to vector<64x128xi32>
    %8 = arith.cmpi slt, %6, %7 : vector<64x128xi32>
    %cst_5 = arith.constant -1.000000e+30 : f32
    %9 = vector.broadcast %cst_5 : f32 to vector<64x128xf32>
    %10 = arith.select %8, %5, %9 : vector<64x128xi1>, vector<64x128xf32>
    %cst_6 = arith.constant dense<0xFF800000> : vector<64xf32>
    %11 = vector.multi_reduction <maximumf>, %10, %cst_6 [1] : vector<64x128xf32> to vector<64xf32>
    %12 = vector.shape_cast %11 : vector<64xf32> to vector<64x1xf32>
    %13 = vector.broadcast %12 : vector<64x1xf32> to vector<64x128xf32>
    %14 = arith.subf %10, %13 : vector<64x128xf32>
    %15 = math.exp %14 : vector<64x128xf32>
    %cst_7 = arith.constant dense<0.000000e+00> : vector<64xf32>
    %16 = vector.multi_reduction <add>, %15, %cst_7 [1] : vector<64x128xf32> to vector<64xf32>
    %17 = vector.shape_cast %16 : vector<64xf32> to vector<64x1xf32>
    %18 = math.log %17 : vector<64x1xf32>
    %19 = vector.broadcast %18 : vector<64x1xf32> to vector<64x128xf32>
    %20 = arith.subf %14, %19 : vector<64x128xf32>
    %c0_8 = arith.constant 0 : index
    %c0_9 = arith.constant 0 : index
    %21 = vector.load %arg4[%c0_8, %c0_9] : memref<64x128xf32, #tpu.memory_space<vmem>>, vector<64x128xf32>
    tpu.vector_store %arg4[%c0_8, %c0_9], %20 {strides = array<i32>} : memref<64x128xf32, #tpu.memory_space<vmem>>, vector<64x128xf32>,
    return
  }
  func.func @transform_0(%arg0: i32) -> (i32, i32) {
    %c0_i32 = arith.constant 0 : i32
    %c0_i32_0 = arith.constant 0 : i32
    return %arg0, %c0_i32 : i32, i32
  }
  func.func @transform_1(%arg0: i32) -> (i32, i32) {
    %c0_i32 = arith.constant 0 : i32
    %c0_i32_0 = arith.constant 0 : i32
    %c0_i32_1 = arith.constant 0 : i32
    return %c0_i32, %c0_i32_0 : i32, i32
  }
  func.func @transform_2(%arg0: i32) -> (i32, i32) {
    %c0_i32 = arith.constant 0 : i32
    %c0_i32_0 = arith.constant 0 : i32
    %c0_i32_1 = arith.constant 0 : i32
    return %c0_i32, %c0_i32_0 : i32, i32
  }
  func.func @transform_3(%arg0: i32) -> (i32, i32) {
    %c0_i32 = arith.constant 0 : i32
    %c0_i32_0 = arith.constant 0 : i32
    return %arg0, %c0_i32 : i32, i32
  }
}

</mosaic_0001>

<llo_original>
// kernel: gcn_forward.3
$region0: #{gcn_forward.3}
  #allocation0 [shape = 'u32[]', space=smem, size = 0x4, offset = 0x4, fixed_abs, tag = 'smem constant byte address 0x4 - core index']
  #allocation1 [shape = 'u32[144,128]{1,0:T(1,128)}', space=vmem, size = 0x12000, scoped, tag = 'internal scratch']
  %s0 = inlined_call_operand.vmem [shape: bf16[640,256], index: 0, kind: input, shape index: {}]
  %s1 = inlined_call_operand.vmem [shape: bf16[256,128], index: 1, kind: input, shape index: {}]
  %s2 = inlined_call_operand.vmem [shape: bf16[640,128], index: 2, kind: output, shape index: {}]
  %s3 = sld [smem:[#allocation0]]
  $region41: #{gcn_forward.3} parent=0
    _
  %s5 = ssub.s32 1, %s3
  %s6 = scalar_select 0, %s5, %s3
  loop: start=0, step=1, limit=7
  $region2: #{gcn_forward.3} parent=0 // loop_pre_header
    _
  $region3: #{gcn_forward.3} parent=0 // loop_header
    %s8 = sphi 0, %s12
    %p9 = scmp.ge.s32.totalorder %s8, 7
    %s18 = sphi 0, %s20
    %s21 = sphi 0, %s18
    %s22 = sphi 0, %s21
    %s38 = sphi 0, %s22
    %s42 = sphi 0, %s42
    %s44 = sphi 0, %s42
    %s45 = sphi 0, %s44
    %s59 = sphi 0, %s45
    %s65 = sphi 0, %s67
    %s68 = sphi 0, %s65
    %s69 = sphi 0, %s68
    %s85 = sphi 0, %s69
  $region4: #{gcn_forward.3} parent=0 // loop_header_branch
    %11 = sbr.rel (%p9) target = $region8
  $region5: #{gcn_forward.3} parent=0 // loop_body
    %s13 = ssub.s32 %s8, 1
    %s14 = ssub.s32 %s8, 2
    %s15 = sadd.s32 %s8, 1
    %s16 = ssub.s32 %s8, %s15
    %p17 = scmp.eq.s32.totalorder %s16, 0
    %s19 = sadd.s32 %s18, 1
    %s20 = scalar_select %p17, %s18, %s19
    %p23 = pneg %p17
    %p24 = scmp.eq.s32.totalorder %s8, 4
    %p25 = por %p23, %p24
    %p26 = scmp.ne.s32.totalorder %s18, %s21
    %p27 = scmp.eq.s32.totalorder %s8, 0
    %p28 = por %p26, %p27
    %p29 = scmp.ne.s32.totalorder %s18, %s21
    %p30 = scmp.eq.s32.totalorder %s13, 4
    %p31 = por %p29, %p30
    %p32 = scmp.ne.s32.totalorder %s21, %s22
    %p33 = scmp.eq.s32.totalorder %s13, 0
    %p34 = por %p32, %p33
    %p35 = scmp.ne.s32.totalorder %s21, %s22
    %p36 = scmp.eq.s32.totalorder %s14, 4
    %p37 = por %p35, %p36
    %p39 = scmp.ne.s32.totalorder %s22, %s38
    %p40 = scmp.eq.s32.totalorder %s14, 0
    %p41 = por %p39, %p40
    %s43 = sadd.s32 %s42, 1
    %p46 = scmp.eq.s32.totalorder %s8, 4
    %p47 = scmp.ne.s32.totalorder %s42, %s44
    %p48 = scmp.eq.s32.totalorder %s8, 0
    %p49 = por %p47, %p48
    %p50 = scmp.ne.s32.totalorder %s42, %s44
    %p51 = scmp.eq.s32.totalorder %s13, 4
    %p52 = por %p50, %p51
    %p53 = scmp.ne.s32.totalorder %s44, %s45
    %p54 = scmp.eq.s32.totalorder %s13, 0
    %p55 = por %p53, %p54
    %p56 = scmp.ne.s32.totalorder %s44, %s45
    %p57 = scmp.eq.s32.totalorder %s14, 4
    %p58 = por %p56, %p57
    %p60 = scmp.ne.s32.totalorder %s45, %s59
    %p61 = scmp.eq.s32.totalorder %s14, 0
    %p62 = por %p60, %p61
    %s63 = ssub.s32 %s8, %s15
    %p64 = scmp.eq.s32.totalorder %s63, 0
    %s66 = sadd.s32 %s65, 1
    %s67 = scalar_select %p64, %s65, %s66
    %p70 = pneg %p64
    %p71 = scmp.eq.s32.totalorder %s8, 4
    %p72 = por %p70, %p71
    %p73 = scmp.ne.s32.totalorder %s65, %s68
    %p74 = scmp.eq.s32.totalorder %s8, 0
    %p75 = por %p73, %p74
    %p76 = scmp.ne.s32.totalorder %s65, %s68
    %p77 = scmp.eq.s32.totalorder %s13, 4
    %p78 = por %p76, %p77
    %p79 = scmp.ne.s32.totalorder %s68, %s69
    %p80 = scmp.eq.s32.totalorder %s13, 0
    %p81 = por %p79, %p80
    %p82 = scmp.ne.s32.totalorder %s68, %s69
    %p83 = scmp.eq.s32.totalorder %s14, 4
    %p84 = por %p82, %p83
    %p86 = scmp.ne.s32.totalorder %s69, %s85
    %p87 = scmp.eq.s32.totalorder %s14, 0
    %p88 = por %p86, %p87
    %p89 = scmp.le.s32.totalorder 1, %s8
    %p90 = scmp.lt.s32.totalorder %s8, 6
    %p91 = pnand %p89, %p90
    %p92 = pneg %p91
    // Predicated region
    $region9: #{gcn_forward.3} parent=5 // pred_check
      _
    $region10: #{gcn_forward.3} parent=5 // pred_check_branch
      %94 = sbr.rel (%p91) target = $region12
    $region11: #{gcn_forward.3} parent=5 // pred_region
      %s95 = ssub.s32 %s8, 1
      // Predicated region
      $region13: #{gcn_forward.3} parent=11 // pred_check
        %p96 = pneg %p55
      $region14: #{gcn_forward.3} parent=11 // pred_check_branch
        %98 = sbr.rel (%p96) target = $region16
      $region15: #{gcn_forward.3} parent=11 // pred_region
        _
      $region16: #{gcn_forward.3} parent=11 // pred_fallthru
        _
    $region12: #{gcn_forward.3} parent=5 // pred_fallthru
      _
    %p99 = scmp.lt.s32.totalorder %s8, 5
    // Predicated region
    $region17: #{gcn_forward.3} parent=5 // pred_check
      %p100 = pneg %p99
    $region18: #{gcn_forward.3} parent=5 // pred_check_branch
      %102 = sbr.rel (%p100) target = $region20
    $region19: #{gcn_forward.3} parent=5 // pred_region
      // Predicated region
      $region21: #{gcn_forward.3} parent=19 // pred_check
        %p103 = pneg %p28
      $region22: #{gcn_forward.3} parent=19 // pred_check_branch
        %105 = sbr.rel (%p103) target = $region24
      $region23: #{gcn_forward.3} parent=19 // pred_region
        %s106 = smul.u32 16, %s8
        %p107 = scmp.lt.s32.totalorder %s106, 79
        %s108 = scalar_select %p107, %s106, 79
        %s109 = smul.addr %s108, 2
        %s110 = smul.addr %s109, 4
        %s111 = scalar_lea.vmem %s0, %s110
        %s112 = smul.u32 16, %s8
      $region24: #{gcn_forward.3} parent=19 // pred_fallthru
        _
    $region20: #{gcn_forward.3} parent=5 // pred_fallthru
      _
    %p113 = scmp.le.s32.totalorder 1, %s8
    %p114 = scmp.lt.s32.totalorder %s8, 6
    %p115 = pnand %p113, %p114
    %p116 = pneg %p115
    // Predicated region
    $region25: #{gcn_forward.3} parent=5 // pred_check
      _
    $region26: #{gcn_forward.3} parent=5 // pred_check_branch
      %118 = sbr.rel (%p115) target = $region28
    $region27: #{gcn_forward.3} parent=5 // pred_region
      %s119 = ssub.s32 %s8, 1
      %s120 = smul.u32 16, %s13
      %p121 = scmp.lt.s32.totalorder %s120, 79
      %s122 = scalar_select %p121, %s120, 79
      %s123 = smul.addr %s122, 2
      %s124 = smul.addr %s123, 4
      %s125 = scalar_lea.vmem %s0, %s124
      %p126 = pneg %p34
      %p127 = pneg %p31
      %p128 = pneg %p55
      %p129 = pneg %p52
      %p130 = pneg %p81
      %p131 = pneg %p78
      %s132 = smul.u32 16, %s13
      %p133 = scmp.lt.s32.totalorder %s132, 79
      %s134 = scalar_select %p133, %s132, 79
      %s135 = smul.addr %s134, 4
      %s136 = scalar_lea.vmem %s2, %s135
      %s137 = smul.u32 16, %s13
      %p138 = scmp.lt.s32.totalorder %s137, 79
      %s139 = scalar_select %p138, %s137, 79
      %s140 = smul.addr %s139, 2
      %s141 = smul.addr %s140, 4
      %s142 = scalar_lea.vmem %s0, %s141
      %s143 = smul.u32 16, %s13
      %s144 = smul.u32 16, %s13
      %p145 = scmp.lt.s32.totalorder %s144, 79
      %s146 = scalar_select %p145, %s144, 79
      %s147 = smul.addr %s146, 4
      %s148 = scalar_lea.vmem %s2, %s147
      %s149 = smul.u32 16, %s13
      %v151 = vld [vmem:[%s142] sm:$0xff]
      %v152 = vld [vmem:[%s142 + $0x8] sm:$0xff]
      %v153 = vld [vmem:[%s142 + $0x10] sm:$0xff]
      %v154 = vld [vmem:[%s142 + $0x18] sm:$0xff]
      %v155 = vld [vmem:[%s142 + $0x20] sm:$0xff]
      %v156 = vld [vmem:[%s142 + $0x28] sm:$0xff]
      %v157 = vld [vmem:[%s142 + $0x30] sm:$0xff]
      %v158 = vld [vmem:[%s142 + $0x38] sm:$0xff]
      %v159 = vld [vmem:[%s142 + $0x40] sm:$0xff]
      %v160 = vld [vmem:[%s142 + $0x48] sm:$0xff]
      %v161 = vld [vmem:[%s142 + $0x50] sm:$0xff]
      %v162 = vld [vmem:[%s142 + $0x58] sm:$0xff]
      %v163 = vld [vmem:[%s142 + $0x60] sm:$0xff]
      %v164 = vld [vmem:[%s142 + $0x68] sm:$0xff]
      %v165 = vld [vmem:[%s142 + $0x70] sm:$0xff]
      %v166 = vld [vmem:[%s142 + $0x78] sm:$0xff]
      %v167 = vld [vmem:[%s1] sm:$0xf]
      %v168 = vld [vmem:[%s1 + $0x4] sm:$0xf]
      %v169 = vld [vmem:[%s1 + $0x8] sm:$0xf]
      %v170 = vld [vmem:[%s1 + $0xc] sm:$0xf]
      %v171 = vld [vmem:[%s1 + $0x10] sm:$0xf]
      %v172 = vld [vmem:[%s1 + $0x14] sm:$0xf]
      %v173 = vld [vmem:[%s1 + $0x18] sm:$0xf]
      %v174 = vld [vmem:[%s1 + $0x1c] sm:$0xf]
      %v175 = vld [vmem:[%s1 + $0x20] sm:$0xf]
      %v176 = vld [vmem:[%s1 + $0x24] sm:$0xf]
      %v177 = vld [vmem:[%s1 + $0x28] sm:$0xf]
      %v178 = vld [vmem:[%s1 + $0x2c] sm:$0xf]
      %v179 = vld [vmem:[%s1 + $0x30] sm:$0xf]
      %v180 = vld [vmem:[%s1 + $0x34] sm:$0xf]
      %v181 = vld [vmem:[%s1 + $0x38] sm:$0xf]
      %v182 = vld [vmem:[%s1 + $0x3c] sm:$0xf]
      %v183 = vld [vmem:[%s1 + $0x40] sm:$0xf]
      %v184 = vld [vmem:[%s1 + $0x44] sm:$0xf]
      %v185 = vld [vmem:[%s1 + $0x48] sm:$0xf]
      %v186 = vld [vmem:[%s1 + $0x4c] sm:$0xf]
      %v187 = vld [vmem:[%s1 + $0x50] sm:$0xf]
      %v188 = vld [vmem:[%s1 + $0x54] sm:$0xf]
      %v189 = vld [vmem:[%s1 + $0x58] sm:$0xf]
      %v190 = vld [vmem:[%s1 + $0x5c] sm:$0xf]
      %v191 = vld [vmem:[%s1 + $0x60] sm:$0xf]
      %v192 = vld [vmem:[%s1 + $0x64] sm:$0xf]
      %v193 = vld [vmem:[%s1 + $0x68] sm:$0xf]
      %v194 = vld [vmem:[%s1 + $0x6c] sm:$0xf]
      %v195 = vld [vmem:[%s1 + $0x70] sm:$0xf]
      %v196 = vld [vmem:[%s1 + $0x74] sm:$0xf]
      %v197 = vld [vmem:[%s1 + $0x78] sm:$0xf]
      %v198 = vld [vmem:[%s1 + $0x7c] sm:$0xf]
      %v215 = vunpack.c.l.b16 %v151
      %v216 = vunpack.c.h.b16 %v151
      %v217 = vunpack.c.l.b16 %v152
      %v218 = vunpack.c.h.b16 %v152
      %v219 = vunpack.c.l.b16 %v153
      %v220 = vunpack.c.h.b16 %v153
      %v221 = vunpack.c.l.b16 %v154
      %v222 = vunpack.c.h.b16 %v154
      %v223 = vunpack.c.l.b16 %v155
      %v224 = vunpack.c.h.b16 %v155
      %v225 = vunpack.c.l.b16 %v156
      %v226 = vunpack.c.h.b16 %v156
      %v227 = vunpack.c.l.b16 %v157
      %v228 = vunpack.c.h.b16 %v157
      %v229 = vunpack.c.l.b16 %v158
      %v230 = vunpack.c.h.b16 %v158
      %v231 = vunpack.c.l.b16 %v159
      %v232 = vunpack.c.h.b16 %v159
      %v233 = vunpack.c.l.b16 %v160
      %v234 = vunpack.c.h.b16 %v160
      %v235 = vunpack.c.l.b16 %v161
      %v236 = vunpack.c.h.b16 %v161
      %v237 = vunpack.c.l.b16 %v162
      %v238 = vunpack.c.h.b16 %v162
      %v239 = vunpack.c.l.b16 %v163
      %v240 = vunpack.c.h.b16 %v163
      %v241 = vunpack.c.l.b16 %v164
      %v242 = vunpack.c.h.b16 %v164
      %v243 = vunpack.c.l.b16 %v165
      %v244 = vunpack.c.h.b16 %v165
      %v245 = vunpack.c.l.b16 %v166
      %v246 = vunpack.c.h.b16 %v166
      %v247 = vpack.c.b16 %v217, %v215
      %v248 = vpack.c.b16 %v218, %v216
      %v249 = vpack.c.b16 %v221, %v219
      %v250 = vpack.c.b16 %v222, %v220
      %v251 = vpack.c.b16 %v225, %v223
      %v252 = vpack.c.b16 %v226, %v224
      %v253 = vpack.c.b16 %v229, %v227
      %v254 = vpack.c.b16 %v230, %v228
      %v255 = vpack.c.b16 %v233, %v231
      %v256 = vpack.c.b16 %v234, %v232
      %v257 = vpack.c.b16 %v237, %v235
      %v258 = vpack.c.b16 %v238, %v236
      %v259 = vpack.c.b16 %v241, %v239
      %v260 = vpack.c.b16 %v242, %v240
      %v261 = vpack.c.b16 %v245, %v243
      %v262 = vpack.c.b16 %v246, %v244
      %v311 = vunpack.c.l.b16 %v167
      %v312 = vunpack.c.l.b16 %v168
      %v313 = vunpack.c.l.b16 %v169
      %v314 = vunpack.c.l.b16 %v170
      %v315 = vunpack.c.l.b16 %v171
      %v316 = vunpack.c.l.b16 %v172
      %v317 = vunpack.c.l.b16 %v173
      %v318 = vunpack.c.l.b16 %v174
      %v319 = vunpack.c.l.b16 %v175
      %v320 = vunpack.c.l.b16 %v176
      %v321 = vunpack.c.l.b16 %v177
      %v322 = vunpack.c.l.b16 %v178
      %v323 = vunpack.c.l.b16 %v179
      %v324 = vunpack.c.l.b16 %v180
      %v325 = vunpack.c.l.b16 %v181
      %v326 = vunpack.c.l.b16 %v182
      %v327 = vunpack.c.l.b16 %v183
      %v328 = vunpack.c.l.b16 %v184
      %v329 = vunpack.c.l.b16 %v185
      %v330 = vunpack.c.l.b16 %v186
      %v331 = vunpack.c.l.b16 %v187
      %v332 = vunpack.c.l.b16 %v188
      %v333 = vunpack.c.l.b16 %v189
      %v334 = vunpack.c.l.b16 %v190
      %v335 = vunpack.c.l.b16 %v191
      %v336 = vunpack.c.l.b16 %v192
      %v337 = vunpack.c.l.b16 %v193
      %v338 = vunpack.c.l.b16 %v194
      %v339 = vunpack.c.l.b16 %v195
      %v340 = vunpack.c.l.b16 %v196
      %v341 = vunpack.c.l.b16 %v197
      %v342 = vunpack.c.l.b16 %v198
      %v343 = vpack.c.b16 %v312, %v311
      %v344 = vpack.c.b16 %v314, %v313
      %v345 = vpack.c.b16 %v316, %v315
      %v346 = vpack.c.b16 %v318, %v317
      %v347 = vpack.c.b16 %v320, %v319
      %v348 = vpack.c.b16 %v322, %v321
      %v349 = vpack.c.b16 %v324, %v323
      %v350 = vpack.c.b16 %v326, %v325
      %v351 = vpack.c.b16 %v328, %v327
      %v352 = vpack.c.b16 %v330, %v329
      %v353 = vpack.c.b16 %v332, %v331
      %v354 = vpack.c.b16 %v334, %v333
      %v355 = vpack.c.b16 %v336, %v335
      %v356 = vpack.c.b16 %v338, %v337
      %v357 = vpack.c.b16 %v340, %v339
      %v358 = vpack.c.b16 %v342, %v341
      %375 = vmatprep.subr.bf16.mxu0 0
      %376 = vmatpush1.bf16.msra.mxu0 %v343
      %377 = vmatprep.subr.bf16.mxu0 0
      %378 = vmatpush1.bf16.msra.mxu0 %v344
      %379 = vmatprep.subr.bf16.mxu0 0
      %380 = vmatpush1.bf16.msra.mxu0 %v345
      %381 = vmatprep.subr.bf16.mxu0 0
      %382 = vmatpush1.bf16.msra.mxu0 %v346
      %383 = vmatprep.subr.bf16.mxu0 0
      %384 = vmatpush1.bf16.msra.mxu0 %v347
      %385 = vmatprep.subr.bf16.mxu0 0
      %386 = vmatpush1.bf16.msra.mxu0 %v348
      %387 = vmatprep.subr.bf16.mxu0 0
      %388 = vmatpush1.bf16.msra.mxu0 %v349
      %389 = vmatprep.subr.bf16.mxu0 0
      %390 = vmatpush1.bf16.msra.mxu0 %v350
      %391 = vmatprep.subr.bf16.mxu0 0
      %392 = vmatpush1.bf16.msra.mxu0 %v351
      %393 = vmatprep.subr.bf16.mxu0 0
      %394 = vmatpush1.bf16.msra.mxu0 %v352
      %395 = vmatprep.subr.bf16.mxu0 0
      %396 = vmatpush1.bf16.msra.mxu0 %v353
      %397 = vmatprep.subr.bf16.mxu0 0
      %398 = vmatpush1.bf16.msra.mxu0 %v354
      %399 = vmatprep.subr.bf16.mxu0 0
      %400 = vmatpush1.bf16.msra.mxu0 %v355
      %401 = vmatprep.subr.bf16.mxu0 0
      %402 = vmatpush1.bf16.msra.mxu0 %v356
      %403 = vmatprep.subr.bf16.mxu0 0
      %404 = vmatpush1.bf16.msra.mxu0 %v357
      %405 = vmatprep.subr.bf16.mxu0 0
      %406 = vmatpush1.bf16.msra.mxu0 %v358
      %407 = vmatprep.mubr.bf16.mxu0 %v248
      %408 = vmatmul.mubr.bf16.gmra.mrb[0].mxu0 %v247
      %v409 = vpop.f32.mrb[0].mxu0
      %v410 = vadd.f32 0.0, %v409
      %v411 = vpop.f32.mrb[0].mxu0
      %v412 = vpop.f32.mrb[0].mxu0
      %v413 = vadd.f32 0.0, %v412
      %v414 = vpop.f32.mrb[0].mxu0
      %415 = vmatprep.mubr.bf16.mxu0 %v250
      %416 = vmatmul.mubr.bf16.gmra.mrb[0].mxu0 %v249
      %v417 = vpop.f32.mrb[0].mxu0
      %v418 = vadd.f32 0.0, %v417
      %v419 = vpop.f32.mrb[0].mxu0
      %v420 = vpop.f32.mrb[0].mxu0
      %v421 = vadd.f32 0.0, %v420
      %v422 = vpop.f32.mrb[0].mxu0
      %423 = vmatprep.mubr.bf16.mxu0 %v252
      %424 = vmatmul.mubr.bf16.gmra.mrb[0].mxu0 %v251
      %v425 = vpop.f32.mrb[0].mxu0
      %v426 = vadd.f32 0.0, %v425
      %v427 = vpop.f32.mrb[0].mxu0
      %v428 = vpop.f32.mrb[0].mxu0
      %v429 = vadd.f32 0.0, %v428
      %v430 = vpop.f32.mrb[0].mxu0
      %431 = vmatprep.mubr.bf16.mxu0 %v254
      %432 = vmatmul.mubr.bf16.gmra.mrb[0].mxu0 %v253
      %v433 = vpop.f32.mrb[0].mxu0
      %v434 = vadd.f32 0.0, %v433
      %v435 = vpop.f32.mrb[0].mxu0
      %v436 = vpop.f32.mrb[0].mxu0
      %v437 = vadd.f32 0.0, %v436
      %v438 = vpop.f32.mrb[0].mxu0
      %439 = vmatprep.mubr.bf16.mxu0 %v256
      %440 = vmatmul.mubr.bf16.gmra.mrb[0].mxu0 %v255
      %v441 = vpop.f32.mrb[0].mxu0
      %v442 = vadd.f32 0.0, %v441
      %v443 = vpop.f32.mrb[0].mxu0
      %v444 = vpop.f32.mrb[0].mxu0
      %v445 = vadd.f32 0.0, %v444
      %v446 = vpop.f32.mrb[0].mxu0
      %447 = vmatprep.mubr.bf16.mxu0 %v258
      %448 = vmatmul.mubr.bf16.gmra.mrb[0].mxu0 %v257
      %v449 = vpop.f32.mrb[0].mxu0
      %v450 = vadd.f32 0.0, %v449
      %v451 = vpop.f32.mrb[0].mxu0
      %v452 = vpop.f32.mrb[0].mxu0
      %v453 = vadd.f32 0.0, %v452
      %v454 = vpop.f32.mrb[0].mxu0
      %455 = vmatprep.mubr.bf16.mxu0 %v260
      %456 = vmatmul.mubr.bf16.gmra.mrb[0].mxu0 %v259
      %v457 = vpop.f32.mrb[0].mxu0
      %v458 = vadd.f32 0.0, %v457
      %v459 = vpop.f32.mrb[0].mxu0
      %v460 = vpop.f32.mrb[0].mxu0
      %v461 = vadd.f32 0.0, %v460
      %v462 = vpop.f32.mrb[0].mxu0
      %463 = vmatprep.mubr.bf16.mxu0 %v262
      %464 = vmatmul.mubr.bf16.gmra.mrb[0].mxu0 %v261
      %v465 = vpop.f32.mrb[0].mxu0
      %v466 = vadd.f32 0.0, %v465
      %v467 = vpop.f32.mrb[0].mxu0
      %v468 = vpop.f32.mrb[0].mxu0
      %v469 = vadd.f32 0.0, %v468
      %v470 = vpop.f32.mrb[0].mxu0
      %471 = vdwg.mxu0
      %v472 = vpack.c.bf16 %v413, %v410
      %v473 = vpack.c.bf16 %v421, %v418
      %v474 = vpack.c.bf16 %v429, %v426
      %v475 = vpack.c.bf16 %v437, %v434
      %v476 = vpack.c.bf16 %v445, %v442
      %v477 = vpack.c.bf16 %v453, %v450
      %v478 = vpack.c.bf16 %v461, %v458
      %v479 = vpack.c.bf16 %v469, %v466
      %v488 = vunpack.c.l.b16 %v472
      %v489 = vunpack.c.h.b16 %v472
      %v490 = vunpack.c.l.b16 %v473
      %v491 = vunpack.c.h.b16 %v473
      %v492 = vunpack.c.l.b16 %v474
      %v493 = vunpack.c.h.b16 %v474
      %v494 = vunpack.c.l.b16 %v475
      %v495 = vunpack.c.h.b16 %v475
      %v496 = vunpack.c.l.b16 %v476
      %v497 = vunpack.c.h.b16 %v476
      %v498 = vunpack.c.l.b16 %v477
      %v499 = vunpack.c.h.b16 %v477
      %v500 = vunpack.c.l.b16 %v478
      %v501 = vunpack.c.h.b16 %v478
      %v502 = vunpack.c.l.b16 %v479
      %v503 = vunpack.c.h.b16 %v479
      %v504 = vpack.c.b16 %v488, %v488
      %v505 = vpack.c.b16 %v489, %v489
      %v506 = vpack.c.b16 %v490, %v490
      %v507 = vpack.c.b16 %v491, %v491
      %v508 = vpack.c.b16 %v492, %v492
      %v509 = vpack.c.b16 %v493, %v493
      %v510 = vpack.c.b16 %v494, %v494
      %v511 = vpack.c.b16 %v495, %v495
      %v512 = vpack.c.b16 %v496, %v496
      %v513 = vpack.c.b16 %v497, %v497
      %v514 = vpack.c.b16 %v498, %v498
      %v515 = vpack.c.b16 %v499, %v499
      %v516 = vpack.c.b16 %v500, %v500
      %v517 = vpack.c.b16 %v501, %v501
      %v518 = vpack.c.b16 %v502, %v502
      %v519 = vpack.c.b16 %v503, %v503
      %536 = vst [vmem:[%s148] sm:$0xf] %v504
      %537 = vst [vmem:[%s148 + $0x4] sm:$0xf] %v505
      %538 = vst [vmem:[%s148 + $0x8] sm:$0xf] %v506
      %539 = vst [vmem:[%s148 + $0xc] sm:$0xf] %v507
      %540 = vst [vmem:[%s148 + $0x10] sm:$0xf] %v508
      %541 = vst [vmem:[%s148 + $0x14] sm:$0xf] %v509
      %542 = vst [vmem:[%s148 + $0x18] sm:$0xf] %v510
      %543 = vst [vmem:[%s148 + $0x1c] sm:$0xf] %v511
      %544 = vst [vmem:[%s148 + $0x20] sm:$0xf] %v512
      %545 = vst [vmem:[%s148 + $0x24] sm:$0xf] %v513
      %546 = vst [vmem:[%s148 + $0x28] sm:$0xf] %v514
      %547 = vst [vmem:[%s148 + $0x2c] sm:$0xf] %v515
      %548 = vst [vmem:[%s148 + $0x30] sm:$0xf] %v516
      %549 = vst [vmem:[%s148 + $0x34] sm:$0xf] %v517
      %550 = vst [vmem:[%s148 + $0x38] sm:$0xf] %v518
      %551 = vst [vmem:[%s148 + $0x3c] sm:$0xf] %v519
      %s552 = smul.u32 16, %s13
      %p553 = scmp.lt.s32.totalorder %s552, 79
      %s554 = scalar_select %p553, %s552, 79
      %s555 = smul.addr %s554, 4
      %s556 = scalar_lea.vmem %s2, %s555
      // Predicated region
      $region29: #{gcn_forward.3} parent=27 // pred_check
        %p557 = pneg %p78
      $region30: #{gcn_forward.3} parent=27 // pred_check_branch
        %559 = sbr.rel (%p557) target = $region32
      $region31: #{gcn_forward.3} parent=27 // pred_region
        %s560 = smul.u32 16, %s13
      $region32: #{gcn_forward.3} parent=27 // pred_fallthru
        _
    $region28: #{gcn_forward.3} parent=5 // pred_fallthru
      _
    %p561 = scmp.le.s32.totalorder 2, %s8
    // Predicated region
    $region33: #{gcn_forward.3} parent=5 // pred_check
      %p562 = pneg %p561
    $region34: #{gcn_forward.3} parent=5 // pred_check_branch
      %564 = sbr.rel (%p562) target = $region36
    $region35: #{gcn_forward.3} parent=5 // pred_region
      %s565 = ssub.s32 %s8, 2
      // Predicated region
      $region37: #{gcn_forward.3} parent=35 // pred_check
        %p566 = pneg %p84
      $region38: #{gcn_forward.3} parent=35 // pred_check_branch
        %568 = sbr.rel (%p566) target = $region40
      $region39: #{gcn_forward.3} parent=35 // pred_region
        %s569 = smul.u32 16, %s14
        %p570 = scmp.lt.s32.totalorder %s569, 79
        %s571 = scalar_select %p570, %s569, 79
        %s572 = smul.addr %s571, 4
        %s573 = scalar_lea.vmem %s2, %s572
      $region40: #{gcn_forward.3} parent=35 // pred_fallthru
        _
    $region36: #{gcn_forward.3} parent=5 // pred_fallthru
      _
  $region6: #{gcn_forward.3} parent=0 // loop_footer
    %s12 = sadd.s32 1, %s8
  $region7: #{gcn_forward.3} parent=0 // loop_footer_branch
    %7 = sbr.rel target = $region3
  $region8: #{gcn_forward.3} parent=0 // loop_exit
    _

// kernel: gcn_forward.5
$region0: #{gcn_forward.5}
  #allocation0 [shape = 'u32[]', space=smem, size = 0x4, offset = 0x4, fixed_abs, tag = 'smem constant byte address 0x4 - core index']
  #allocation1 [shape = 'u32[144,128]{1,0:T(1,128)}', space=vmem, size = 0x12000, scoped, tag = 'internal scratch']
  %s0 = inlined_call_operand.vmem [shape: bf16[128,384], index: 0, kind: input, shape index: {}]
  %s1 = inlined_call_operand.vmem [shape: bf16[384,128], index: 1, kind: input, shape index: {}]
  %s2 = inlined_call_operand.vmem [shape: f32[1,128], index: 2, kind: input, shape index: {}]
  %s3 = inlined_call_operand.vmem [shape: f32[128,128], index: 3, kind: output, shape index: {}]
  %s4 = sld [smem:[#allocation0]]
  $region45: #{gcn_forward.5} parent=0
    _
  %s6 = ssub.s32 1, %s4
  %s7 = scalar_select 0, %s6, %s4
  loop: start=0, step=1, limit=4
  $region2: #{gcn_forward.5} parent=0 // loop_pre_header
    _
  $region3: #{gcn_forward.5} parent=0 // loop_header
    %s9 = sphi 0, %s13
    %p10 = scmp.ge.s32.totalorder %s9, 4
    %s19 = sphi 0, %s21
    %s22 = sphi 0, %s19
    %s23 = sphi 0, %s22
    %s39 = sphi 0, %s23
    %s43 = sphi 0, %s43
    %s45 = sphi 0, %s43
    %s46 = sphi 0, %s45
    %s60 = sphi 0, %s46
    %s64 = sphi 0, %s64
    %s66 = sphi 0, %s64
    %s67 = sphi 0, %s66
    %s81 = sphi 0, %s67
    %s87 = sphi 0, %s89
    %s90 = sphi 0, %s87
    %s91 = sphi 0, %s90
    %s107 = sphi 0, %s91
  $region4: #{gcn_forward.5} parent=0 // loop_header_branch
    %12 = sbr.rel (%p10) target = $region8
  $region5: #{gcn_forward.5} parent=0 // loop_body
    %s14 = ssub.s32 %s9, 1
    %s15 = ssub.s32 %s9, 2
    %s16 = sadd.s32 %s9, 1
    %s17 = ssub.s32 %s9, %s16
    %p18 = scmp.eq.s32.totalorder %s17, 0
    %s20 = sadd.s32 %s19, 1
    %s21 = scalar_select %p18, %s19, %s20
    %p24 = pneg %p18
    %p25 = scmp.eq.s32.totalorder %s9, 1
    %p26 = por %p24, %p25
    %p27 = scmp.ne.s32.totalorder %s19, %s22
    %p28 = scmp.eq.s32.totalorder %s9, 0
    %p29 = por %p27, %p28
    %p30 = scmp.ne.s32.totalorder %s19, %s22
    %p31 = scmp.eq.s32.totalorder %s14, 1
    %p32 = por %p30, %p31
    %p33 = scmp.ne.s32.totalorder %s22, %s23
    %p34 = scmp.eq.s32.totalorder %s14, 0
    %p35 = por %p33, %p34
    %p36 = scmp.ne.s32.totalorder %s22, %s23
    %p37 = scmp.eq.s32.totalorder %s15, 1
    %p38 = por %p36, %p37
    %p40 = scmp.ne.s32.totalorder %s23, %s39
    %p41 = scmp.eq.s32.totalorder %s15, 0
    %p42 = por %p40, %p41
    %s44 = sadd.s32 %s43, 1
    %p47 = scmp.eq.s32.totalorder %s9, 1
    %p48 = scmp.ne.s32.totalorder %s43, %s45
    %p49 = scmp.eq.s32.totalorder %s9, 0
    %p50 = por %p48, %p49
    %p51 = scmp.ne.s32.totalorder %s43, %s45
    %p52 = scmp.eq.s32.totalorder %s14, 1
    %p53 = por %p51, %p52
    %p54 = scmp.ne.s32.totalorder %s45, %s46
    %p55 = scmp.eq.s32.totalorder %s14, 0
    %p56 = por %p54, %p55
    %p57 = scmp.ne.s32.totalorder %s45, %s46
    %p58 = scmp.eq.s32.totalorder %s15, 1
    %p59 = por %p57, %p58
    %p61 = scmp.ne.s32.totalorder %s46, %s60
    %p62 = scmp.eq.s32.totalorder %s15, 0
    %p63 = por %p61, %p62
    %s65 = sadd.s32 %s64, 1
    %p68 = scmp.eq.s32.totalorder %s9, 1
    %p69 = scmp.ne.s32.totalorder %s64, %s66
    %p70 = scmp.eq.s32.totalorder %s9, 0
    %p71 = por %p69, %p70
    %p72 = scmp.ne.s32.totalorder %s64, %s66
    %p73 = scmp.eq.s32.totalorder %s14, 1
    %p74 = por %p72, %p73
    %p75 = scmp.ne.s32.totalorder %s66, %s67
    %p76 = scmp.eq.s32.totalorder %s14, 0
    %p77 = por %p75, %p76
    %p78 = scmp.ne.s32.totalorder %s66, %s67
    %p79 = scmp.eq.s32.totalorder %s15, 1
    %p80 = por %p78, %p79
    %p82 = scmp.ne.s32.totalorder %s67, %s81
    %p83 = scmp.eq.s32.totalorder %s15, 0
    %p84 = por %p82, %p83
    %s85 = ssub.s32 %s9, %s16
    %p86 = scmp.eq.s32.totalorder %s85, 0
    %s88 = sadd.s32 %s87, 1
    %s89 = scalar_select %p86, %s87, %s88
    %p92 = pneg %p86
    %p93 = scmp.eq.s32.totalorder %s9, 1
    %p94 = por %p92, %p93
    %p95 = scmp.ne.s32.totalorder %s87, %s90
    %p96 = scmp.eq.s32.totalorder %s9, 0
    %p97 = por %p95, %p96
    %p98 = scmp.ne.s32.totalorder %s87, %s90
    %p99 = scmp.eq.s32.totalorder %s14, 1
    %p100 = por %p98, %p99
    %p101 = scmp.ne.s32.totalorder %s90, %s91
    %p102 = scmp.eq.s32.totalorder %s14, 0
    %p103 = por %p101, %p102
    %p104 = scmp.ne.s32.totalorder %s90, %s91
    %p105 = scmp.eq.s32.totalorder %s15, 1
    %p106 = por %p104, %p105
    %p108 = scmp.ne.s32.totalorder %s91, %s107
    %p109 = scmp.eq.s32.totalorder %s15, 0
    %p110 = por %p108, %p109
    %p111 = scmp.le.s32.totalorder 1, %s9
    %p112 = scmp.lt.s32.totalorder %s9, 3
    %p113 = pnand %p111, %p112
    %p114 = pneg %p113
    // Predicated region
    $region9: #{gcn_forward.5} parent=5 // pred_check
      _
    $region10: #{gcn_forward.5} parent=5 // pred_check_branch
      %116 = sbr.rel (%p113) target = $region12
    $region11: #{gcn_forward.5} parent=5 // pred_region
      %s117 = ssub.s32 %s9, 1
      // Predicated region
      $region13: #{gcn_forward.5} parent=11 // pred_check
        %p118 = pneg %p56
      $region14: #{gcn_forward.5} parent=11 // pred_check_branch
        %120 = sbr.rel (%p118) target = $region16
      $region15: #{gcn_forward.5} parent=11 // pred_region
        _
      $region16: #{gcn_forward.5} parent=11 // pred_fallthru
        _
      // Predicated region
      $region17: #{gcn_forward.5} parent=11 // pred_check
        %p121 = pneg %p77
      $region18: #{gcn_forward.5} parent=11 // pred_check_branch
        %123 = sbr.rel (%p121) target = $region20
      $region19: #{gcn_forward.5} parent=11 // pred_region
        _
      $region20: #{gcn_forward.5} parent=11 // pred_fallthru
        _
    $region12: #{gcn_forward.5} parent=5 // pred_fallthru
      _
    %p124 = scmp.lt.s32.totalorder %s9, 2
    // Predicated region
    $region21: #{gcn_forward.5} parent=5 // pred_check
      %p125 = pneg %p124
    $region22: #{gcn_forward.5} parent=5 // pred_check_branch
      %127 = sbr.rel (%p125) target = $region24
    $region23: #{gcn_forward.5} parent=5 // pred_region
      // Predicated region
      $region25: #{gcn_forward.5} parent=23 // pred_check
        %p128 = pneg %p29
      $region26: #{gcn_forward.5} parent=23 // pred_check_branch
        %130 = sbr.rel (%p128) target = $region28
      $region27: #{gcn_forward.5} parent=23 // pred_region
        %s131 = smul.u32 8, %s9
        %p132 = scmp.lt.s32.totalorder %s131, 15
        %s133 = scalar_select %p132, %s131, 15
        %s134 = smul.addr %s133, 3
        %s135 = smul.addr %s134, 4
        %s136 = scalar_lea.vmem %s0, %s135
        %s137 = smul.u32 8, %s9
      $region28: #{gcn_forward.5} parent=23 // pred_fallthru
        _
    $region24: #{gcn_forward.5} parent=5 // pred_fallthru
      _
    %p138 = scmp.le.s32.totalorder 1, %s9
    %p139 = scmp.lt.s32.totalorder %s9, 3
    %p140 = pnand %p138, %p139
    %p141 = pneg %p140
    // Predicated region
    $region29: #{gcn_forward.5} parent=5 // pred_check
      _
    $region30: #{gcn_forward.5} parent=5 // pred_check_branch
      %143 = sbr.rel (%p140) target = $region32
    $region31: #{gcn_forward.5} parent=5 // pred_region
      %s144 = ssub.s32 %s9, 1
      %s145 = smul.u32 8, %s14
      %p146 = scmp.lt.s32.totalorder %s145, 15
      %s147 = scalar_select %p146, %s145, 15
      %s148 = smul.addr %s147, 3
      %s149 = smul.addr %s148, 4
      %s150 = scalar_lea.vmem %s0, %s149
      %p151 = pneg %p35
      %p152 = pneg %p32
      %p153 = pneg %p56
      %p154 = pneg %p53
      %p155 = pneg %p77
      %p156 = pneg %p74
      %p157 = pneg %p103
      %p158 = pneg %p100
      %s159 = smul.u32 8, %s14
      %p160 = scmp.lt.s32.totalorder %s159, 15
      %s161 = scalar_select %p160, %s159, 15
      %s162 = smul.addr %s161, 8
      %s163 = scalar_lea.vmem %s3, %s162
      %s164 = smul.u32 8, %s14
      %p165 = scmp.lt.s32.totalorder %s164, 15
      %s166 = scalar_select %p165, %s164, 15
      %s167 = smul.addr %s166, 3
      %s168 = smul.addr %s167, 4
      %s169 = scalar_lea.vmem %s0, %s168
      %s170 = smul.u32 8, %s14
      %s171 = smul.u32 8, %s14
      %p172 = scmp.lt.s32.totalorder %s171, 15
      %s173 = scalar_select %p172, %s171, 15
      %s174 = smul.addr %s173, 8
      %s175 = scalar_lea.vmem %s3, %s174
      %s176 = smul.u32 8, %s14
      %v178 = vld [vmem:[%s169] sm:$0xff]
      %v179 = vld [vmem:[%s169 + $0x8] sm:$0xf]
      %v180 = vld [vmem:[%s169 + $0xc] sm:$0xff]
      %v181 = vld [vmem:[%s169 + $0x14] sm:$0xf]
      %v182 = vld [vmem:[%s169 + $0x18] sm:$0xff]
      %v183 = vld [vmem:[%s169 + $0x20] sm:$0xf]
      %v184 = vld [vmem:[%s169 + $0x24] sm:$0xff]
      %v185 = vld [vmem:[%s169 + $0x2c] sm:$0xf]
      %v186 = vld [vmem:[%s169 + $0x30] sm:$0xff]
      %v187 = vld [vmem:[%s169 + $0x38] sm:$0xf]
      %v188 = vld [vmem:[%s169 + $0x3c] sm:$0xff]
      %v189 = vld [vmem:[%s169 + $0x44] sm:$0xf]
      %v190 = vld [vmem:[%s169 + $0x48] sm:$0xff]
      %v191 = vld [vmem:[%s169 + $0x50] sm:$0xf]
      %v192 = vld [vmem:[%s169 + $0x54] sm:$0xff]
      %v193 = vld [vmem:[%s169 + $0x5c] sm:$0xf]
      %v194 = vld [vmem:[%s1] sm:$0xf]
      %v195 = vld [vmem:[%s1 + $0x4] sm:$0xf]
      %v196 = vld [vmem:[%s1 + $0x8] sm:$0xf]
      %v197 = vld [vmem:[%s1 + $0xc] sm:$0xf]
      %v198 = vld [vmem:[%s1 + $0x10] sm:$0xf]
      %v199 = vld [vmem:[%s1 + $0x14] sm:$0xf]
      %v200 = vld [vmem:[%s1 + $0x18] sm:$0xf]
      %v201 = vld [vmem:[%s1 + $0x1c] sm:$0xf]
      %v202 = vld [vmem:[%s1 + $0x20] sm:$0xf]
      %v203 = vld [vmem:[%s1 + $0x24] sm:$0xf]
      %v204 = vld [vmem:[%s1 + $0x28] sm:$0xf]
      %v205 = vld [vmem:[%s1 + $0x2c] sm:$0xf]
      %v206 = vld [vmem:[%s1 + $0x30] sm:$0xf]
      %v207 = vld [vmem:[%s1 + $0x34] sm:$0xf]
      %v208 = vld [vmem:[%s1 + $0x38] sm:$0xf]
      %v209 = vld [vmem:[%s1 + $0x3c] sm:$0xf]
      %v210 = vld [vmem:[%s1 + $0x40] sm:$0xf]
      %v211 = vld [vmem:[%s1 + $0x44] sm:$0xf]
      %v212 = vld [vmem:[%s1 + $0x48] sm:$0xf]
      %v213 = vld [vmem:[%s1 + $0x4c] sm:$0xf]
      %v214 = vld [vmem:[%s1 + $0x50] sm:$0xf]
      %v215 = vld [vmem:[%s1 + $0x54] sm:$0xf]
      %v216 = vld [vmem:[%s1 + $0x58] sm:$0xf]
      %v217 = vld [vmem:[%s1 + $0x5c] sm:$0xf]
      %v218 = vld [vmem:[%s1 + $0x60] sm:$0xf]
      %v219 = vld [vmem:[%s1 + $0x64] sm:$0xf]
      %v220 = vld [vmem:[%s1 + $0x68] sm:$0xf]
      %v221 = vld [vmem:[%s1 + $0x6c] sm:$0xf]
      %v222 = vld [vmem:[%s1 + $0x70] sm:$0xf]
      %v223 = vld [vmem:[%s1 + $0x74] sm:$0xf]
      %v224 = vld [vmem:[%s1 + $0x78] sm:$0xf]
      %v225 = vld [vmem:[%s1 + $0x7c] sm:$0xf]
      %v226 = vld [vmem:[%s1 + $0x80] sm:$0xf]
      %v227 = vld [vmem:[%s1 + $0x84] sm:$0xf]
      %v228 = vld [vmem:[%s1 + $0x88] sm:$0xf]
      %v229 = vld [vmem:[%s1 + $0x8c] sm:$0xf]
      %v230 = vld [vmem:[%s1 + $0x90] sm:$0xf]
      %v231 = vld [vmem:[%s1 + $0x94] sm:$0xf]
      %v232 = vld [vmem:[%s1 + $0x98] sm:$0xf]
      %v233 = vld [vmem:[%s1 + $0x9c] sm:$0xf]
      %v234 = vld [vmem:[%s1 + $0xa0] sm:$0xf]
      %v235 = vld [vmem:[%s1 + $0xa4] sm:$0xf]
      %v236 = vld [vmem:[%s1 + $0xa8] sm:$0xf]
      %v237 = vld [vmem:[%s1 + $0xac] sm:$0xf]
      %v238 = vld [vmem:[%s1 + $0xb0] sm:$0xf]
      %v239 = vld [vmem:[%s1 + $0xb4] sm:$0xf]
      %v240 = vld [vmem:[%s1 + $0xb8] sm:$0xf]
      %v241 = vld [vmem:[%s1 + $0xbc] sm:$0xf]
      %v242 = vld [vmem:[%s2] sm:$0x1]
      %v244 = vlaneseq
      %v245 = vshrl.u32 %v244, 7
      %v246 = vsub.s32 0, %v245
      %v247 = vrot.slane %v242, %v246
      %v265 = vunpack.c.l.b16 %v178
      %v266 = vunpack.c.h.b16 %v178
      %v267 = vunpack.c.l.b16 %v179
      %v268 = vunpack.c.l.b16 %v180
      %v269 = vunpack.c.h.b16 %v180
      %v270 = vunpack.c.l.b16 %v181
      %v271 = vunpack.c.l.b16 %v182
      %v272 = vunpack.c.h.b16 %v182
      %v273 = vunpack.c.l.b16 %v183
      %v274 = vunpack.c.l.b16 %v184
      %v275 = vunpack.c.h.b16 %v184
      %v276 = vunpack.c.l.b16 %v185
      %v277 = vunpack.c.l.b16 %v186
      %v278 = vunpack.c.h.b16 %v186
      %v279 = vunpack.c.l.b16 %v187
      %v280 = vunpack.c.l.b16 %v188
      %v281 = vunpack.c.h.b16 %v188
      %v282 = vunpack.c.l.b16 %v189
      %v283 = vunpack.c.l.b16 %v190
      %v284 = vunpack.c.h.b16 %v190
      %v285 = vunpack.c.l.b16 %v191
      %v286 = vunpack.c.l.b16 %v192
      %v287 = vunpack.c.h.b16 %v192
      %v288 = vunpack.c.l.b16 %v193
      %v289 = vpack.c.b16 %v268, %v265
      %v290 = vpack.c.b16 %v269, %v266
      %v291 = vpack.c.b16 %v270, %v267
      %v292 = vpack.c.b16 %v274, %v271
      %v293 = vpack.c.b16 %v275, %v272
      %v294 = vpack.c.b16 %v276, %v273
      %v295 = vpack.c.b16 %v280, %v277
      %v296 = vpack.c.b16 %v281, %v278
      %v297 = vpack.c.b16 %v282, %v279
      %v298 = vpack.c.b16 %v286, %v283
      %v299 = vpack.c.b16 %v287, %v284
      %v300 = vpack.c.b16 %v288, %v285
      %v361 = vunpack.c.l.b16 %v194
      %v362 = vunpack.c.l.b16 %v195
      %v363 = vunpack.c.l.b16 %v196
      %v364 = vunpack.c.l.b16 %v197
      %v365 = vunpack.c.l.b16 %v198
      %v366 = vunpack.c.l.b16 %v199
      %v367 = vunpack.c.l.b16 %v200
      %v368 = vunpack.c.l.b16 %v201
      %v369 = vunpack.c.l.b16 %v202
      %v370 = vunpack.c.l.b16 %v203
      %v371 = vunpack.c.l.b16 %v204
      %v372 = vunpack.c.l.b16 %v205
      %v373 = vunpack.c.l.b16 %v206
      %v374 = vunpack.c.l.b16 %v207
      %v375 = vunpack.c.l.b16 %v208
      %v376 = vunpack.c.l.b16 %v209
      %v377 = vunpack.c.l.b16 %v210
      %v378 = vunpack.c.l.b16 %v211
      %v379 = vunpack.c.l.b16 %v212
      %v380 = vunpack.c.l.b16 %v213
      %v381 = vunpack.c.l.b16 %v214
      %v382 = vunpack.c.l.b16 %v215
      %v383 = vunpack.c.l.b16 %v216
      %v384 = vunpack.c.l.b16 %v217
      %v385 = vunpack.c.l.b16 %v218
      %v386 = vunpack.c.l.b16 %v219
      %v387 = vunpack.c.l.b16 %v220
      %v388 = vunpack.c.l.b16 %v221
      %v389 = vunpack.c.l.b16 %v222
      %v390 = vunpack.c.l.b16 %v223
      %v391 = vunpack.c.l.b16 %v224
      %v392 = vunpack.c.l.b16 %v225
      %v393 = vunpack.c.l.b16 %v226
      %v394 = vunpack.c.l.b16 %v227
      %v395 = vunpack.c.l.b16 %v228
      %v396 = vunpack.c.l.b16 %v229
      %v397 = vunpack.c.l.b16 %v230
      %v398 = vunpack.c.l.b16 %v231
      %v399 = vunpack.c.l.b16 %v232
      %v400 = vunpack.c.l.b16 %v233
      %v401 = vunpack.c.l.b16 %v234
      %v402 = vunpack.c.l.b16 %v235
      %v403 = vunpack.c.l.b16 %v236
      %v404 = vunpack.c.l.b16 %v237
      %v405 = vunpack.c.l.b16 %v238
      %v406 = vunpack.c.l.b16 %v239
      %v407 = vunpack.c.l.b16 %v240
      %v408 = vunpack.c.l.b16 %v241
      %v409 = vpack.c.b16 %v362, %v361
      %v410 = vpack.c.b16 %v364, %v363
      %v411 = vpack.c.b16 %v366, %v365
      %v412 = vpack.c.b16 %v368, %v367
      %v413 = vpack.c.b16 %v370, %v369
      %v414 = vpack.c.b16 %v372, %v371
      %v415 = vpack.c.b16 %v374, %v373
      %v416 = vpack.c.b16 %v376, %v375
      %v417 = vpack.c.b16 %v378, %v377
      %v418 = vpack.c.b16 %v380, %v379
      %v419 = vpack.c.b16 %v382, %v381
      %v420 = vpack.c.b16 %v384, %v383
      %v421 = vpack.c.b16 %v386, %v385
      %v422 = vpack.c.b16 %v388, %v387
      %v423 = vpack.c.b16 %v390, %v389
      %v424 = vpack.c.b16 %v392, %v391
      %v425 = vpack.c.b16 %v394, %v393
      %v426 = vpack.c.b16 %v396, %v395
      %v427 = vpack.c.b16 %v398, %v397
      %v428 = vpack.c.b16 %v400, %v399
      %v429 = vpack.c.b16 %v402, %v401
      %v430 = vpack.c.b16 %v404, %v403
      %v431 = vpack.c.b16 %v406, %v405
      %v432 = vpack.c.b16 %v408, %v407
      %457 = vmatprep.subr.bf16.mxu0 0
      %458 = vmatpush1.bf16.msra.mxu0 %v409
      %459 = vmatprep.subr.bf16.mxu0 0
      %460 = vmatpush1.bf16.msra.mxu0 %v410
      %461 = vmatprep.subr.bf16.mxu0 0
      %462 = vmatpush1.bf16.msra.mxu0 %v411
      %463 = vmatprep.subr.bf16.mxu0 0
      %464 = vmatpush1.bf16.msra.mxu0 %v412
      %465 = vmatprep.subr.bf16.mxu0 0
      %466 = vmatpush1.bf16.msra.mxu0 %v413
      %467 = vmatprep.subr.bf16.mxu0 0
      %468 = vmatpush1.bf16.msra.mxu0 %v414
      %469 = vmatprep.subr.bf16.mxu0 0
      %470 = vmatpush1.bf16.msra.mxu0 %v415
      %471 = vmatprep.subr.bf16.mxu0 0
      %472 = vmatpush1.bf16.msra.mxu0 %v416
      %473 = vmatprep.subr.bf16.mxu0 0
      %474 = vmatpush1.bf16.msra.mxu0 %v417
      %475 = vmatprep.subr.bf16.mxu0 0
      %476 = vmatpush1.bf16.msra.mxu0 %v418
      %477 = vmatprep.subr.bf16.mxu0 0
      %478 = vmatpush1.bf16.msra.mxu0 %v419
      %479 = vmatprep.subr.bf16.mxu0 0
      %480 = vmatpush1.bf16.msra.mxu0 %v420
      %481 = vmatprep.subr.bf16.mxu0 0
      %482 = vmatpush1.bf16.msra.mxu0 %v421
      %483 = vmatprep.subr.bf16.mxu0 0
      %484 = vmatpush1.bf16.msra.mxu0 %v422
      %485 = vmatprep.subr.bf16.mxu0 0
      %486 = vmatpush1.bf16.msra.mxu0 %v423
      %487 = vmatprep.subr.bf16.mxu0 0
      %488 = vmatpush1.bf16.msra.mxu0 %v424
      %489 = vmatprep.mubr.bf16.mxu0 %v290
      %490 = vmatmul.mubr.bf16.gmra.mrb[0].mxu0 %v289
      %v491 = vpop.f32.mrb[0].mxu0
      %v492 = vadd.f32 %v247, %v491
      %v493 = vpop.f32.mrb[0].mxu0
      %v494 = vpop.f32.mrb[0].mxu0
      %v495 = vadd.f32 %v247, %v494
      %v496 = vpop.f32.mrb[0].mxu0
      %497 = vmatprep.mubr.bf16.mxu0 %v293
      %498 = vmatmul.mubr.bf16.gmra.mrb[0].mxu0 %v292
      %v499 = vpop.f32.mrb[0].mxu0
      %v500 = vadd.f32 %v247, %v499
      %v501 = vpop.f32.mrb[0].mxu0
      %v502 = vpop.f32.mrb[0].mxu0
      %v503 = vadd.f32 %v247, %v502
      %v504 = vpop.f32.mrb[0].mxu0
      %505 = vmatprep.mubr.bf16.mxu0 %v296
      %506 = vmatmul.mubr.bf16.gmra.mrb[0].mxu0 %v295
      %v507 = vpop.f32.mrb[0].mxu0
      %v508 = vadd.f32 %v247, %v507
      %v509 = vpop.f32.mrb[0].mxu0
      %v510 = vpop.f32.mrb[0].mxu0
      %v511 = vadd.f32 %v247, %v510
      %v512 = vpop.f32.mrb[0].mxu0
      %513 = vmatprep.mubr.bf16.mxu0 %v299
      %514 = vmatmul.mubr.bf16.gmra.mrb[0].mxu0 %v298
      %v515 = vpop.f32.mrb[0].mxu0
      %v516 = vadd.f32 %v247, %v515
      %v517 = vpop.f32.mrb[0].mxu0
      %v518 = vpop.f32.mrb[0].mxu0
      %v519 = vadd.f32 %v247, %v518
      %v520 = vpop.f32.mrb[0].mxu0
      %521 = vdwg.mxu0
      %522 = vmatprep.subr.bf16.mxu0 0
      %523 = vmatpush1.bf16.msra.mxu0 %v425
      %524 = vmatprep.subr.bf16.mxu0 0
      %525 = vmatpush1.bf16.msra.mxu0 %v426
      %526 = vmatprep.subr.bf16.mxu0 0
      %527 = vmatpush1.bf16.msra.mxu0 %v427
      %528 = vmatprep.subr.bf16.mxu0 0
      %529 = vmatpush1.bf16.msra.mxu0 %v428
      %530 = vmatprep.subr.bf16.mxu0 0
      %531 = vmatpush1.bf16.msra.mxu0 %v429
      %532 = vmatprep.subr.bf16.mxu0 0
      %533 = vmatpush1.bf16.msra.mxu0 %v430
      %534 = vmatprep.subr.bf16.mxu0 0
      %535 = vmatpush1.bf16.msra.mxu0 %v431
      %536 = vmatprep.subr.bf16.mxu0 0
      %537 = vmatpush1.bf16.msra.mxu0 %v432
      %538 = vmatprep.subr.bf16.mxu0 0
      %539 = vmatpush1.bf16.msra.mxu0 0
      %540 = vmatprep.subr.bf16.mxu0 0
      %541 = vmatpush1.bf16.msra.mxu0 0
      %542 = vmatprep.subr.bf16.mxu0 0
      %543 = vmatpush1.bf16.msra.mxu0 0
      %544 = vmatprep.subr.bf16.mxu0 0
      %545 = vmatpush1.bf16.msra.mxu0 0
      %546 = vmatprep.subr.bf16.mxu0 0
      %547 = vmatpush1.bf16.msra.mxu0 0
      %548 = vmatprep.subr.bf16.mxu0 0
      %549 = vmatpush1.bf16.msra.mxu0 0
      %550 = vmatprep.subr.bf16.mxu0 0
      %551 = vmatpush1.bf16.msra.mxu0 0
      %552 = vmatprep.subr.bf16.mxu0 0
      %553 = vmatpush1.bf16.msra.mxu0 0
      %554 = vmatprep.mubr.bf16.mxu0 0
      %555 = vmatmul.mubr.bf16.gmra.mrb[0].mxu0 %v291
      %v556 = vpop.f32.mrb[0].mxu0
      %v557 = vadd.f32 %v492, %v556
      %v558 = vpop.f32.mrb[0].mxu0
      %v559 = vpop.f32.mrb[0].mxu0
      %v560 = vadd.f32 %v495, %v559
      %v561 = vpop.f32.mrb[0].mxu0
      %562 = vmatprep.mubr.bf16.mxu0 0
      %563 = vmatmul.mubr.bf16.gmra.mrb[0].mxu0 %v294
      %v564 = vpop.f32.mrb[0].mxu0
      %v565 = vadd.f32 %v500, %v564
      %v566 = vpop.f32.mrb[0].mxu0
      %v567 = vpop.f32.mrb[0].mxu0
      %v568 = vadd.f32 %v503, %v567
      %v569 = vpop.f32.mrb[0].mxu0
      %570 = vmatprep.mubr.bf16.mxu0 0
      %571 = vmatmul.mubr.bf16.gmra.mrb[0].mxu0 %v297
      %v572 = vpop.f32.mrb[0].mxu0
      %v573 = vadd.f32 %v508, %v572
      %v574 = vpop.f32.mrb[0].mxu0
      %v575 = vpop.f32.mrb[0].mxu0
      %v576 = vadd.f32 %v511, %v575
      %v577 = vpop.f32.mrb[0].mxu0
      %578 = vmatprep.mubr.bf16.mxu0 0
      %579 = vmatmul.mubr.bf16.gmra.mrb[0].mxu0 %v300
      %v580 = vpop.f32.mrb[0].mxu0
      %v581 = vadd.f32 %v516, %v580
      %v582 = vpop.f32.mrb[0].mxu0
      %v583 = vpop.f32.mrb[0].mxu0
      %v584 = vadd.f32 %v519, %v583
      %v585 = vpop.f32.mrb[0].mxu0
      %586 = vdwg.mxu0
      %v587 = vlaneseq
      %v588 = vand.u32 %v587, 127
      %vm589 = vcmp.lt.s32.totalorder %v588, 7
      %v590 = vsel %vm589, %v557, -1e+30
      %v591 = vsel %vm589, %v560, -1e+30
      %v592 = vsel %vm589, %v565, -1e+30
      %v593 = vsel %vm589, %v568, -1e+30
      %v594 = vsel %vm589, %v573, -1e+30
      %v595 = vsel %vm589, %v576, -1e+30
      %v596 = vsel %vm589, %v581, -1e+30
      %v597 = vsel %vm589, %v584, -1e+30
      %598 = vmax.xlane.f32.xlu0 %v590
      %v599 = vpop.xlane.xlu0 %598
      %600 = vmax.xlane.f32.xlu0 %v591
      %v601 = vpop.xlane.xlu0 %600
      %602 = vmax.xlane.f32.xlu0 %v592
      %v603 = vpop.xlane.xlu0 %602
      %604 = vmax.xlane.f32.xlu0 %v593
      %v605 = vpop.xlane.xlu0 %604
      %606 = vmax.xlane.f32.xlu0 %v594
      %v607 = vpop.xlane.xlu0 %606
      %608 = vmax.xlane.f32.xlu0 %v595
      %v609 = vpop.xlane.xlu0 %608
      %610 = vmax.xlane.f32.xlu0 %v596
      %v611 = vpop.xlane.xlu0 %610
      %612 = vmax.xlane.f32.xlu0 %v597
      %v613 = vpop.xlane.xlu0 %612
      %v614 = vsub.f32 %v590, %v599
      %v615 = vsub.f32 %v591, %v601
      %v616 = vsub.f32 %v592, %v603
      %v617 = vsub.f32 %v593, %v605
      %v618 = vsub.f32 %v594, %v607
      %v619 = vsub.f32 %v595, %v609
      %v620 = vsub.f32 %v596, %v611
      %v621 = vsub.f32 %v597, %v613
      %v622 = vmul.f32 %v614, 1.442695
      %v623 = vpow.pop %v622
      %v624 = vmul.f32 %v615, 1.442695
      %v625 = vpow.pop %v624
      %v626 = vmul.f32 %v616, 1.442695
      %v627 = vpow.pop %v626
      %v628 = vmul.f32 %v617, 1.442695
      %v629 = vpow.pop %v628
      %v630 = vmul.f32 %v618, 1.442695
      %v631 = vpow.pop %v630
      %v632 = vmul.f32 %v619, 1.442695
      %v633 = vpow.pop %v632
      %v634 = vmul.f32 %v620, 1.442695
      %v635 = vpow.pop %v634
      %v636 = vmul.f32 %v621, 1.442695
      %v637 = vpow.pop %v636
      %638 = vadd.xlane.f32.xlu0 %v623
      %v639 = vpop.xlane.xlu0 %638
      %640 = vadd.xlane.f32.xlu0 %v625
      %v641 = vpop.xlane.xlu0 %640
      %642 = vadd.xlane.f32.xlu0 %v627
      %v643 = vpop.xlane.xlu0 %642
      %644 = vadd.xlane.f32.xlu0 %v629
      %v645 = vpop.xlane.xlu0 %644
      %646 = vadd.xlane.f32.xlu0 %v631
      %v647 = vpop.xlane.xlu0 %646
      %648 = vadd.xlane.f32.xlu0 %v633
      %v649 = vpop.xlane.xlu0 %648
      %650 = vadd.xlane.f32.xlu0 %v635
      %v651 = vpop.xlane.xlu0 %650
      %652 = vadd.xlane.f32.xlu0 %v637
      %v653 = vpop.xlane.xlu0 %652
      %v654 = vlog2.pop %v639
      %v655 = vmul.f32 %v654, 0.6931472
      %v656 = vlog2.pop %v641
      %v657 = vmul.f32 %v656, 0.6931472
      %v658 = vlog2.pop %v643
      %v659 = vmul.f32 %v658, 0.6931472
      %v660 = vlog2.pop %v645
      %v661 = vmul.f32 %v660, 0.6931472
      %v662 = vlog2.pop %v647
      %v663 = vmul.f32 %v662, 0.6931472
      %v664 = vlog2.pop %v649
      %v665 = vmul.f32 %v664, 0.6931472
      %v666 = vlog2.pop %v651
      %v667 = vmul.f32 %v666, 0.6931472
      %v668 = vlog2.pop %v653
      %v669 = vmul.f32 %v668, 0.6931472
      %v670 = vsub.f32 %v614, %v655
      %v671 = vsub.f32 %v615, %v657
      %v672 = vsub.f32 %v616, %v659
      %v673 = vsub.f32 %v617, %v661
      %v674 = vsub.f32 %v618, %v663
      %v675 = vsub.f32 %v619, %v665
      %v676 = vsub.f32 %v620, %v667
      %v677 = vsub.f32 %v621, %v669
      %678 = vst [vmem:[%s175] sm:$0xff] %v670
      %679 = vst [vmem:[%s175 + $0x8] sm:$0xff] %v671
      %680 = vst [vmem:[%s175 + $0x10] sm:$0xff] %v672
      %681 = vst [vmem:[%s175 + $0x18] sm:$0xff] %v673
      %682 = vst [vmem:[%s175 + $0x20] sm:$0xff] %v674
      %683 = vst [vmem:[%s175 + $0x28] sm:$0xff] %v675
      %684 = vst [vmem:[%s175 + $0x30] sm:$0xff] %v676
      %685 = vst [vmem:[%s175 + $0x38] sm:$0xff] %v677
      %s686 = smul.u32 8, %s14
      %p687 = scmp.lt.s32.totalorder %s686, 15
      %s688 = scalar_select %p687, %s686, 15
      %s689 = smul.addr %s688, 8
      %s690 = scalar_lea.vmem %s3, %s689
      // Predicated region
      $region33: #{gcn_forward.5} parent=31 // pred_check
        %p691 = pneg %p100
      $region34: #{gcn_forward.5} parent=31 // pred_check_branch
        %693 = sbr.rel (%p691) target = $region36
      $region35: #{gcn_forward.5} parent=31 // pred_region
        %s694 = smul.u32 8, %s14
      $region36: #{gcn_forward.5} parent=31 // pred_fallthru
        _
    $region32: #{gcn_forward.5} parent=5 // pred_fallthru
      _
    %p695 = scmp.le.s32.totalorder 2, %s9
    // Predicated region
    $region37: #{gcn_forward.5} parent=5 // pred_check
      %p696 = pneg %p695
    $region38: #{gcn_forward.5} parent=5 // pred_check_branch
      %698 = sbr.rel (%p696) target = $region40
    $region39: #{gcn_forward.5} parent=5 // pred_region
      %s699 = ssub.s32 %s9, 2
      // Predicated region
      $region41: #{gcn_forward.5} parent=39 // pred_check
        %p700 = pneg %p106
      $region42: #{gcn_forward.5} parent=39 // pred_check_branch
        %702 = sbr.rel (%p700) target = $region44
      $region43: #{gcn_forward.5} parent=39 // pred_region
        %s703 = smul.u32 8, %s15
        %p704 = scmp.lt.s32.totalorder %s703, 15
        %s705 = scalar_select %p704, %s703, 15
        %s706 = smul.addr %s705, 8
        %s707 = scalar_lea.vmem %s3, %s706
      $region44: #{gcn_forward.5} parent=39 // pred_fallthru
        _
    $region40: #{gcn_forward.5} parent=5 // pred_fallthru
      _
  $region6: #{gcn_forward.5} parent=0 // loop_footer
    %s13 = sadd.s32 1, %s9
  $region7: #{gcn_forward.5} parent=0 // loop_footer_branch
    %8 = sbr.rel target = $region3
  $region8: #{gcn_forward.5} parent=0 // loop_exit
    _

// kernel: gcn_forward.4
$region0: #{gcn_forward.4}
  #allocation0 [shape = 'u32[]', space=smem, size = 0x4, offset = 0x4, fixed_abs, tag = 'smem constant byte address 0x4 - core index']
  #allocation1 [shape = 'u32[144,128]{1,0:T(1,128)}', space=vmem, size = 0x12000, scoped, tag = 'internal scratch']
  %s0 = inlined_call_operand.vmem [shape: bf16[384,640], index: 0, kind: input, shape index: {}]
  %s1 = inlined_call_operand.vmem [shape: bf16[640,128], index: 1, kind: input, shape index: {}]
  %s2 = inlined_call_operand.vmem [shape: f32[1,128], index: 2, kind: input, shape index: {}]
  %s3 = inlined_call_operand.vmem [shape: bf16[128,128], index: 3, kind: input, shape index: {}]
  %s4 = inlined_call_operand.vmem [shape: bf16[384,128], index: 4, kind: output, shape index: {}]
  %s5 = sld [smem:[#allocation0]]
  $region49: #{gcn_forward.4} parent=0
    _
  %s7 = ssub.s32 1, %s5
  %s8 = scalar_select 0, %s7, %s5
  loop: start=0, step=1, limit=5
  $region2: #{gcn_forward.4} parent=0 // loop_pre_header
    _
  $region3: #{gcn_forward.4} parent=0 // loop_header
    %s10 = sphi 0, %s14
    %p11 = scmp.ge.s32.totalorder %s10, 5
    %s20 = sphi 0, %s22
    %s23 = sphi 0, %s20
    %s24 = sphi 0, %s23
    %s40 = sphi 0, %s24
    %s44 = sphi 0, %s44
    %s46 = sphi 0, %s44
    %s47 = sphi 0, %s46
    %s61 = sphi 0, %s47
    %s65 = sphi 0, %s65
    %s67 = sphi 0, %s65
    %s68 = sphi 0, %s67
    %s82 = sphi 0, %s68
    %s86 = sphi 0, %s86
    %s88 = sphi 0, %s86
    %s89 = sphi 0, %s88
    %s103 = sphi 0, %s89
    %s109 = sphi 0, %s111
    %s112 = sphi 0, %s109
    %s113 = sphi 0, %s112
    %s129 = sphi 0, %s113
  $region4: #{gcn_forward.4} parent=0 // loop_header_branch
    %13 = sbr.rel (%p11) target = $region8
  $region5: #{gcn_forward.4} parent=0 // loop_body
    %s15 = ssub.s32 %s10, 1
    %s16 = ssub.s32 %s10, 2
    %s17 = sadd.s32 %s10, 1
    %s18 = ssub.s32 %s10, %s17
    %p19 = scmp.eq.s32.totalorder %s18, 0
    %s21 = sadd.s32 %s20, 1
    %s22 = scalar_select %p19, %s20, %s21
    %p25 = pneg %p19
    %p26 = scmp.eq.s32.totalorder %s10, 2
    %p27 = por %p25, %p26
    %p28 = scmp.ne.s32.totalorder %s20, %s23
    %p29 = scmp.eq.s32.totalorder %s10, 0
    %p30 = por %p28, %p29
    %p31 = scmp.ne.s32.totalorder %s20, %s23
    %p32 = scmp.eq.s32.totalorder %s15, 2
    %p33 = por %p31, %p32
    %p34 = scmp.ne.s32.totalorder %s23, %s24
    %p35 = scmp.eq.s32.totalorder %s15, 0
    %p36 = por %p34, %p35
    %p37 = scmp.ne.s32.totalorder %s23, %s24
    %p38 = scmp.eq.s32.totalorder %s16, 2
    %p39 = por %p37, %p38
    %p41 = scmp.ne.s32.totalorder %s24, %s40
    %p42 = scmp.eq.s32.totalorder %s16, 0
    %p43 = por %p41, %p42
    %s45 = sadd.s32 %s44, 1
    %p48 = scmp.eq.s32.totalorder %s10, 2
    %p49 = scmp.ne.s32.totalorder %s44, %s46
    %p50 = scmp.eq.s32.totalorder %s10, 0
    %p51 = por %p49, %p50
    %p52 = scmp.ne.s32.totalorder %s44, %s46
    %p53 = scmp.eq.s32.totalorder %s15, 2
    %p54 = por %p52, %p53
    %p55 = scmp.ne.s32.totalorder %s46, %s47
    %p56 = scmp.eq.s32.totalorder %s15, 0
    %p57 = por %p55, %p56
    %p58 = scmp.ne.s32.totalorder %s46, %s47
    %p59 = scmp.eq.s32.totalorder %s16, 2
    %p60 = por %p58, %p59
    %p62 = scmp.ne.s32.totalorder %s47, %s61
    %p63 = scmp.eq.s32.totalorder %s16, 0
    %p64 = por %p62, %p63
    %s66 = sadd.s32 %s65, 1
    %p69 = scmp.eq.s32.totalorder %s10, 2
    %p70 = scmp.ne.s32.totalorder %s65, %s67
    %p71 = scmp.eq.s32.totalorder %s10, 0
    %p72 = por %p70, %p71
    %p73 = scmp.ne.s32.totalorder %s65, %s67
    %p74 = scmp.eq.s32.totalorder %s15, 2
    %p75 = por %p73, %p74
    %p76 = scmp.ne.s32.totalorder %s67, %s68
    %p77 = scmp.eq.s32.totalorder %s15, 0
    %p78 = por %p76, %p77
    %p79 = scmp.ne.s32.totalorder %s67, %s68
    %p80 = scmp.eq.s32.totalorder %s16, 2
    %p81 = por %p79, %p80
    %p83 = scmp.ne.s32.totalorder %s68, %s82
    %p84 = scmp.eq.s32.totalorder %s16, 0
    %p85 = por %p83, %p84
    %s87 = sadd.s32 %s86, 1
    %p90 = scmp.eq.s32.totalorder %s10, 2
    %p91 = scmp.ne.s32.totalorder %s86, %s88
    %p92 = scmp.eq.s32.totalorder %s10, 0
    %p93 = por %p91, %p92
    %p94 = scmp.ne.s32.totalorder %s86, %s88
    %p95 = scmp.eq.s32.totalorder %s15, 2
    %p96 = por %p94, %p95
    %p97 = scmp.ne.s32.totalorder %s88, %s89
    %p98 = scmp.eq.s32.totalorder %s15, 0
    %p99 = por %p97, %p98
    %p100 = scmp.ne.s32.totalorder %s88, %s89
    %p101 = scmp.eq.s32.totalorder %s16, 2
    %p102 = por %p100, %p101
    %p104 = scmp.ne.s32.totalorder %s89, %s103
    %p105 = scmp.eq.s32.totalorder %s16, 0
    %p106 = por %p104, %p105
    %s107 = ssub.s32 %s10, %s17
    %p108 = scmp.eq.s32.totalorder %s107, 0
    %s110 = sadd.s32 %s109, 1
    %s111 = scalar_select %p108, %s109, %s110
    %p114 = pneg %p108
    %p115 = scmp.eq.s32.totalorder %s10, 2
    %p116 = por %p114, %p115
    %p117 = scmp.ne.s32.totalorder %s109, %s112
    %p118 = scmp.eq.s32.totalorder %s10, 0
    %p119 = por %p117, %p118
    %p120 = scmp.ne.s32.totalorder %s109, %s112
    %p121 = scmp.eq.s32.totalorder %s15, 2
    %p122 = por %p120, %p121
    %p123 = scmp.ne.s32.totalorder %s112, %s113
    %p124 = scmp.eq.s32.totalorder %s15, 0
    %p125 = por %p123, %p124
    %p126 = scmp.ne.s32.totalorder %s112, %s113
    %p127 = scmp.eq.s32.totalorder %s16, 2
    %p128 = por %p126, %p127
    %p130 = scmp.ne.s32.totalorder %s113, %s129
    %p131 = scmp.eq.s32.totalorder %s16, 0
    %p132 = por %p130, %p131
    %p133 = scmp.le.s32.totalorder 1, %s10
    %p134 = scmp.lt.s32.totalorder %s10, 4
    %p135 = pnand %p133, %p134
    %p136 = pneg %p135
    // Predicated region
    $region9: #{gcn_forward.4} parent=5 // pred_check
      _
    $region10: #{gcn_forward.4} parent=5 // pred_check_branch
      %138 = sbr.rel (%p135) target = $region12
    $region11: #{gcn_forward.4} parent=5 // pred_region
      %s139 = ssub.s32 %s10, 1
      // Predicated region
      $region13: #{gcn_forward.4} parent=11 // pred_check
        %p140 = pneg %p57
      $region14: #{gcn_forward.4} parent=11 // pred_check_branch
        %142 = sbr.rel (%p140) target = $region16
      $region15: #{gcn_forward.4} parent=11 // pred_region
        _
      $region16: #{gcn_forward.4} parent=11 // pred_fallthru
        _
      // Predicated region
      $region17: #{gcn_forward.4} parent=11 // pred_check
        %p143 = pneg %p78
      $region18: #{gcn_forward.4} parent=11 // pred_check_branch
        %145 = sbr.rel (%p143) target = $region20
      $region19: #{gcn_forward.4} parent=11 // pred_region
        _
      $region20: #{gcn_forward.4} parent=11 // pred_fallthru
        _
      // Predicated region
      $region21: #{gcn_forward.4} parent=11 // pred_check
        %p146 = pneg %p99
      $region22: #{gcn_forward.4} parent=11 // pred_check_branch
        %148 = sbr.rel (%p146) target = $region24
      $region23: #{gcn_forward.4} parent=11 // pred_region
        _
      $region24: #{gcn_forward.4} parent=11 // pred_fallthru
        _
    $region12: #{gcn_forward.4} parent=5 // pred_fallthru
      _
    %p149 = scmp.lt.s32.totalorder %s10, 3
    // Predicated region
    $region25: #{gcn_forward.4} parent=5 // pred_check
      %p150 = pneg %p149
    $region26: #{gcn_forward.4} parent=5 // pred_check_branch
      %152 = sbr.rel (%p150) target = $region28
    $region27: #{gcn_forward.4} parent=5 // pred_region
      // Predicated region
      $region29: #{gcn_forward.4} parent=27 // pred_check
        %p153 = pneg %p30
      $region30: #{gcn_forward.4} parent=27 // pred_check_branch
        %155 = sbr.rel (%p153) target = $region32
      $region31: #{gcn_forward.4} parent=27 // pred_region
        %s156 = smul.u32 16, %s10
        %p157 = scmp.lt.s32.totalorder %s156, 47
        %s158 = scalar_select %p157, %s156, 47
        %s159 = smul.addr %s158, 5
        %s160 = smul.addr %s159, 4
        %s161 = scalar_lea.vmem %s0, %s160
        %s162 = smul.u32 16, %s10
      $region32: #{gcn_forward.4} parent=27 // pred_fallthru
        _
    $region28: #{gcn_forward.4} parent=5 // pred_fallthru
      _
    %p163 = scmp.le.s32.totalorder 1, %s10
    %p164 = scmp.lt.s32.totalorder %s10, 4
    %p165 = pnand %p163, %p164
    %p166 = pneg %p165
    // Predicated region
    $region33: #{gcn_forward.4} parent=5 // pred_check
      _
    $region34: #{gcn_forward.4} parent=5 // pred_check_branch
      %168 = sbr.rel (%p165) target = $region36
    $region35: #{gcn_forward.4} parent=5 // pred_region
      %s169 = ssub.s32 %s10, 1
      %s170 = smul.u32 16, %s15
      %p171 = scmp.lt.s32.totalorder %s170, 47
      %s172 = scalar_select %p171, %s170, 47
      %s173 = smul.addr %s172, 5
      %s174 = smul.addr %s173, 4
      %s175 = scalar_lea.vmem %s0, %s174
      %p176 = pneg %p36
      %p177 = pneg %p33
      %p178 = pneg %p57
      %p179 = pneg %p54
      %p180 = pneg %p78
      %p181 = pneg %p75
      %p182 = pneg %p99
      %p183 = pneg %p96
      %p184 = pneg %p125
      %p185 = pneg %p122
      %s186 = smul.u32 16, %s15
      %p187 = scmp.lt.s32.totalorder %s186, 47
      %s188 = scalar_select %p187, %s186, 47
      %s189 = smul.addr %s188, 4
      %s190 = scalar_lea.vmem %s4, %s189
      %s191 = smul.u32 16, %s15
      %p192 = scmp.lt.s32.totalorder %s191, 47
      %s193 = scalar_select %p192, %s191, 47
      %s194 = smul.addr %s193, 5
      %s195 = smul.addr %s194, 4
      %s196 = scalar_lea.vmem %s0, %s195
      %s197 = smul.u32 16, %s15
      %s198 = smul.u32 16, %s15
      %p199 = scmp.lt.s32.totalorder %s198, 47
      %s200 = scalar_select %p199, %s198, 47
      %s201 = smul.addr %s200, 4
      %s202 = scalar_lea.vmem %s4, %s201
      %s203 = smul.u32 16, %s15
      %v205 = vld [vmem:[%s196] sm:$0xff]
      %v206 = vld [vmem:[%s196 + $0x8] sm:$0xff]
      %v207 = vld [vmem:[%s196 + $0x10] sm:$0xf]
      %v208 = vld [vmem:[%s196 + $0x14] sm:$0xff]
      %v209 = vld [vmem:[%s196 + $0x1c] sm:$0xff]
      %v210 = vld [vmem:[%s196 + $0x24] sm:$0xf]
      %v211 = vld [vmem:[%s196 + $0x28] sm:$0xff]
      %v212 = vld [vmem:[%s196 + $0x30] sm:$0xff]
      %v213 = vld [vmem:[%s196 + $0x38] sm:$0xf]
      %v214 = vld [vmem:[%s196 + $0x3c] sm:$0xff]
      %v215 = vld [vmem:[%s196 + $0x44] sm:$0xff]
      %v216 = vld [vmem:[%s196 + $0x4c] sm:$0xf]
      %v217 = vld [vmem:[%s196 + $0x50] sm:$0xff]
      %v218 = vld [vmem:[%s196 + $0x58] sm:$0xff]
      %v219 = vld [vmem:[%s196 + $0x60] sm:$0xf]
      %v220 = vld [vmem:[%s196 + $0x64] sm:$0xff]
      %v221 = vld [vmem:[%s196 + $0x6c] sm:$0xff]
      %v222 = vld [vmem:[%s196 + $0x74] sm:$0xf]
      %v223 = vld [vmem:[%s196 + $0x78] sm:$0xff]
      %v224 = vld [vmem:[%s196 + $0x80] sm:$0xff]
      %v225 = vld [vmem:[%s196 + $0x88] sm:$0xf]
      %v226 = vld [vmem:[%s196 + $0x8c] sm:$0xff]
      %v227 = vld [vmem:[%s196 + $0x94] sm:$0xff]
      %v228 = vld [vmem:[%s196 + $0x9c] sm:$0xf]
      %v229 = vld [vmem:[%s196 + $0xa0] sm:$0xff]
      %v230 = vld [vmem:[%s196 + $0xa8] sm:$0xff]
      %v231 = vld [vmem:[%s196 + $0xb0] sm:$0xf]
      %v232 = vld [vmem:[%s196 + $0xb4] sm:$0xff]
      %v233 = vld [vmem:[%s196 + $0xbc] sm:$0xff]
      %v234 = vld [vmem:[%s196 + $0xc4] sm:$0xf]
      %v235 = vld [vmem:[%s196 + $0xc8] sm:$0xff]
      %v236 = vld [vmem:[%s196 + $0xd0] sm:$0xff]
      %v237 = vld [vmem:[%s196 + $0xd8] sm:$0xf]
      %v238 = vld [vmem:[%s196 + $0xdc] sm:$0xff]
      %v239 = vld [vmem:[%s196 + $0xe4] sm:$0xff]
      %v240 = vld [vmem:[%s196 + $0xec] sm:$0xf]
      %v241 = vld [vmem:[%s196 + $0xf0] sm:$0xff]
      %v242 = vld [vmem:[%s196 + $0xf8] sm:$0xff]
      %v243 = vld [vmem:[%s196 + $0x100] sm:$0xf]
      %v244 = vld [vmem:[%s196 + $0x104] sm:$0xff]
      %v245 = vld [vmem:[%s196 + $0x10c] sm:$0xff]
      %v246 = vld [vmem:[%s196 + $0x114] sm:$0xf]
      %v247 = vld [vmem:[%s196 + $0x118] sm:$0xff]
      %v248 = vld [vmem:[%s196 + $0x120] sm:$0xff]
      %v249 = vld [vmem:[%s196 + $0x128] sm:$0xf]
      %v250 = vld [vmem:[%s196 + $0x12c] sm:$0xff]
      %v251 = vld [vmem:[%s196 + $0x134] sm:$0xff]
      %v252 = vld [vmem:[%s196 + $0x13c] sm:$0xf]
      %v253 = vld [vmem:[%s1] sm:$0xf]
      %v254 = vld [vmem:[%s1 + $0x4] sm:$0xf]
      %v255 = vld [vmem:[%s1 + $0x8] sm:$0xf]
      %v256 = vld [vmem:[%s1 + $0xc] sm:$0xf]
      %v257 = vld [vmem:[%s1 + $0x10] sm:$0xf]
      %v258 = vld [vmem:[%s1 + $0x14] sm:$0xf]
      %v259 = vld [vmem:[%s1 + $0x18] sm:$0xf]
      %v260 = vld [vmem:[%s1 + $0x1c] sm:$0xf]
      %v261 = vld [vmem:[%s1 + $0x20] sm:$0xf]
      %v262 = vld [vmem:[%s1 + $0x24] sm:$0xf]
      %v263 = vld [vmem:[%s1 + $0x28] sm:$0xf]
      %v264 = vld [vmem:[%s1 + $0x2c] sm:$0xf]
      %v265 = vld [vmem:[%s1 + $0x30] sm:$0xf]
      %v266 = vld [vmem:[%s1 + $0x34] sm:$0xf]
      %v267 = vld [vmem:[%s1 + $0x38] sm:$0xf]
      %v268 = vld [vmem:[%s1 + $0x3c] sm:$0xf]
      %v269 = vld [vmem:[%s1 + $0x40] sm:$0xf]
      %v270 = vld [vmem:[%s1 + $0x44] sm:$0xf]
      %v271 = vld [vmem:[%s1 + $0x48] sm:$0xf]
      %v272 = vld [vmem:[%s1 + $0x4c] sm:$0xf]
      %v273 = vld [vmem:[%s1 + $0x50] sm:$0xf]
      %v274 = vld [vmem:[%s1 + $0x54] sm:$0xf]
      %v275 = vld [vmem:[%s1 + $0x58] sm:$0xf]
      %v276 = vld [vmem:[%s1 + $0x5c] sm:$0xf]
      %v277 = vld [vmem:[%s1 + $0x60] sm:$0xf]
      %v278 = vld [vmem:[%s1 + $0x64] sm:$0xf]
      %v279 = vld [vmem:[%s1 + $0x68] sm:$0xf]
      %v280 = vld [vmem:[%s1 + $0x6c] sm:$0xf]
      %v281 = vld [vmem:[%s1 + $0x70] sm:$0xf]
      %v282 = vld [vmem:[%s1 + $0x74] sm:$0xf]
      %v283 = vld [vmem:[%s1 + $0x78] sm:$0xf]
      %v284 = vld [vmem:[%s1 + $0x7c] sm:$0xf]
      %v285 = vld [vmem:[%s1 + $0x80] sm:$0xf]
      %v286 = vld [vmem:[%s1 + $0x84] sm:$0xf]
      %v287 = vld [vmem:[%s1 + $0x88] sm:$0xf]
      %v288 = vld [vmem:[%s1 + $0x8c] sm:$0xf]
      %v289 = vld [vmem:[%s1 + $0x90] sm:$0xf]
      %v290 = vld [vmem:[%s1 + $0x94] sm:$0xf]
      %v291 = vld [vmem:[%s1 + $0x98] sm:$0xf]
      %v292 = vld [vmem:[%s1 + $0x9c] sm:$0xf]
      %v293 = vld [vmem:[%s1 + $0xa0] sm:$0xf]
      %v294 = vld [vmem:[%s1 + $0xa4] sm:$0xf]
      %v295 = vld [vmem:[%s1 + $0xa8] sm:$0xf]
      %v296 = vld [vmem:[%s1 + $0xac] sm:$0xf]
      %v297 = vld [vmem:[%s1 + $0xb0] sm:$0xf]
      %v298 = vld [vmem:[%s1 + $0xb4] sm:$0xf]
      %v299 = vld [vmem:[%s1 + $0xb8] sm:$0xf]
      %v300 = vld [vmem:[%s1 + $0xbc] sm:$0xf]
      %v301 = vld [vmem:[%s1 + $0xc0] sm:$0xf]
      %v302 = vld [vmem:[%s1 + $0xc4] sm:$0xf]
      %v303 = vld [vmem:[%s1 + $0xc8] sm:$0xf]
      %v304 = vld [vmem:[%s1 + $0xcc] sm:$0xf]
      %v305 = vld [vmem:[%s1 + $0xd0] sm:$0xf]
      %v306 = vld [vmem:[%s1 + $0xd4] sm:$0xf]
      %v307 = vld [vmem:[%s1 + $0xd8] sm:$0xf]
      %v308 = vld [vmem:[%s1 + $0xdc] sm:$0xf]
      %v309 = vld [vmem:[%s1 + $0xe0] sm:$0xf]
      %v310 = vld [vmem:[%s1 + $0xe4] sm:$0xf]
      %v311 = vld [vmem:[%s1 + $0xe8] sm:$0xf]
      %v312 = vld [vmem:[%s1 + $0xec] sm:$0xf]
      %v313 = vld [vmem:[%s1 + $0xf0] sm:$0xf]
      %v314 = vld [vmem:[%s1 + $0xf4] sm:$0xf]
      %v315 = vld [vmem:[%s1 + $0xf8] sm:$0xf]
      %v316 = vld [vmem:[%s1 + $0xfc] sm:$0xf]
      %v317 = vld [vmem:[%s1 + $0x100] sm:$0xf]
      %v318 = vld [vmem:[%s1 + $0x104] sm:$0xf]
      %v319 = vld [vmem:[%s1 + $0x108] sm:$0xf]
      %v320 = vld [vmem:[%s1 + $0x10c] sm:$0xf]
      %v321 = vld [vmem:[%s1 + $0x110] sm:$0xf]
      %v322 = vld [vmem:[%s1 + $0x114] sm:$0xf]
      %v323 = vld [vmem:[%s1 + $0x118] sm:$0xf]
      %v324 = vld [vmem:[%s1 + $0x11c] sm:$0xf]
      %v325 = vld [vmem:[%s1 + $0x120] sm:$0xf]
      %v326 = vld [vmem:[%s1 + $0x124] sm:$0xf]
      %v327 = vld [vmem:[%s1 + $0x128] sm:$0xf]
      %v328 = vld [vmem:[%s1 + $0x12c] sm:$0xf]
      %v329 = vld [vmem:[%s1 + $0x130] sm:$0xf]
      %v330 = vld [vmem:[%s1 + $0x134] sm:$0xf]
      %v331 = vld [vmem:[%s1 + $0x138] sm:$0xf]
      %v332 = vld [vmem:[%s1 + $0x13c] sm:$0xf]
      %v333 = vld [vmem:[%s2] sm:$0x1]
      %v335 = vlaneseq
      %v336 = vshrl.u32 %v335, 7
      %v337 = vsub.s32 0, %v336
      %v338 = vrot.slane %v333, %v337
      %v388 = vunpack.c.l.b16 %v205
      %v389 = vunpack.c.h.b16 %v205
      %v390 = vunpack.c.l.b16 %v206
      %v391 = vunpack.c.h.b16 %v206
      %v392 = vunpack.c.l.b16 %v207
      %v393 = vunpack.c.l.b16 %v208
      %v394 = vunpack.c.h.b16 %v208
      %v395 = vunpack.c.l.b16 %v209
      %v396 = vunpack.c.h.b16 %v209
      %v397 = vunpack.c.l.b16 %v210
      %v398 = vunpack.c.l.b16 %v211
      %v399 = vunpack.c.h.b16 %v211
      %v400 = vunpack.c.l.b16 %v212
      %v401 = vunpack.c.h.b16 %v212
      %v402 = vunpack.c.l.b16 %v213
      %v403 = vunpack.c.l.b16 %v214
      %v404 = vunpack.c.h.b16 %v214
      %v405 = vunpack.c.l.b16 %v215
      %v406 = vunpack.c.h.b16 %v215
      %v407 = vunpack.c.l.b16 %v216
      %v408 = vunpack.c.l.b16 %v217
      %v409 = vunpack.c.h.b16 %v217
      %v410 = vunpack.c.l.b16 %v218
      %v411 = vunpack.c.h.b16 %v218
      %v412 = vunpack.c.l.b16 %v219
      %v413 = vunpack.c.l.b16 %v220
      %v414 = vunpack.c.h.b16 %v220
      %v415 = vunpack.c.l.b16 %v221
      %v416 = vunpack.c.h.b16 %v221
      %v417 = vunpack.c.l.b16 %v222
      %v418 = vunpack.c.l.b16 %v223
      %v419 = vunpack.c.h.b16 %v223
      %v420 = vunpack.c.l.b16 %v224
      %v421 = vunpack.c.h.b16 %v224
      %v422 = vunpack.c.l.b16 %v225
      %v423 = vunpack.c.l.b16 %v226
      %v424 = vunpack.c.h.b16 %v226
      %v425 = vunpack.c.l.b16 %v227
      %v426 = vunpack.c.h.b16 %v227
      %v427 = vunpack.c.l.b16 %v228
      %v428 = vunpack.c.l.b16 %v229
      %v429 = vunpack.c.h.b16 %v229
      %v430 = vunpack.c.l.b16 %v230
      %v431 = vunpack.c.h.b16 %v230
      %v432 = vunpack.c.l.b16 %v231
      %v433 = vunpack.c.l.b16 %v232
      %v434 = vunpack.c.h.b16 %v232
      %v435 = vunpack.c.l.b16 %v233
      %v436 = vunpack.c.h.b16 %v233
      %v437 = vunpack.c.l.b16 %v234
      %v438 = vunpack.c.l.b16 %v235
      %v439 = vunpack.c.h.b16 %v235
      %v440 = vunpack.c.l.b16 %v236
      %v441 = vunpack.c.h.b16 %v236
      %v442 = vunpack.c.l.b16 %v237
      %v443 = vunpack.c.l.b16 %v238
      %v444 = vunpack.c.h.b16 %v238
      %v445 = vunpack.c.l.b16 %v239
      %v446 = vunpack.c.h.b16 %v239
      %v447 = vunpack.c.l.b16 %v240
      %v448 = vunpack.c.l.b16 %v241
      %v449 = vunpack.c.h.b16 %v241
      %v450 = vunpack.c.l.b16 %v242
      %v451 = vunpack.c.h.b16 %v242
      %v452 = vunpack.c.l.b16 %v243
      %v453 = vunpack.c.l.b16 %v244
      %v454 = vunpack.c.h.b16 %v244
      %v455 = vunpack.c.l.b16 %v245
      %v456 = vunpack.c.h.b16 %v245
      %v457 = vunpack.c.l.b16 %v246
      %v458 = vunpack.c.l.b16 %v247
      %v459 = vunpack.c.h.b16 %v247
      %v460 = vunpack.c.l.b16 %v248
      %v461 = vunpack.c.h.b16 %v248
      %v462 = vunpack.c.l.b16 %v249
      %v463 = vunpack.c.l.b16 %v250
      %v464 = vunpack.c.h.b16 %v250
      %v465 = vunpack.c.l.b16 %v251
      %v466 = vunpack.c.h.b16 %v251
      %v467 = vunpack.c.l.b16 %v252
      %v468 = vpack.c.b16 %v393, %v388
      %v469 = vpack.c.b16 %v394, %v389
      %v470 = vpack.c.b16 %v395, %v390
      %v471 = vpack.c.b16 %v396, %v391
      %v472 = vpack.c.b16 %v397, %v392
      %v473 = vpack.c.b16 %v403, %v398
      %v474 = vpack.c.b16 %v404, %v399
      %v475 = vpack.c.b16 %v405, %v400
      %v476 = vpack.c.b16 %v406, %v401
      %v477 = vpack.c.b16 %v407, %v402
      %v478 = vpack.c.b16 %v413, %v408
      %v479 = vpack.c.b16 %v414, %v409
      %v480 = vpack.c.b16 %v415, %v410
      %v481 = vpack.c.b16 %v416, %v411
      %v482 = vpack.c.b16 %v417, %v412
      %v483 = vpack.c.b16 %v423, %v418
      %v484 = vpack.c.b16 %v424, %v419
      %v485 = vpack.c.b16 %v425, %v420
      %v486 = vpack.c.b16 %v426, %v421
      %v487 = vpack.c.b16 %v427, %v422
      %v488 = vpack.c.b16 %v433, %v428
      %v489 = vpack.c.b16 %v434, %v429
      %v490 = vpack.c.b16 %v435, %v430
      %v491 = vpack.c.b16 %v436, %v431
      %v492 = vpack.c.b16 %v437, %v432
      %v493 = vpack.c.b16 %v443, %v438
      %v494 = vpack.c.b16 %v444, %v439
      %v495 = vpack.c.b16 %v445, %v440
      %v496 = vpack.c.b16 %v446, %v441
      %v497 = vpack.c.b16 %v447, %v442
      %v498 = vpack.c.b16 %v453, %v448
      %v499 = vpack.c.b16 %v454, %v449
      %v500 = vpack.c.b16 %v455, %v450
      %v501 = vpack.c.b16 %v456, %v451
      %v502 = vpack.c.b16 %v457, %v452
      %v503 = vpack.c.b16 %v463, %v458
      %v504 = vpack.c.b16 %v464, %v459
      %v505 = vpack.c.b16 %v465, %v460
      %v506 = vpack.c.b16 %v466, %v461
      %v507 = vpack.c.b16 %v467, %v462
      %v628 = vunpack.c.l.b16 %v253
      %v629 = vunpack.c.l.b16 %v254
      %v630 = vunpack.c.l.b16 %v255
      %v631 = vunpack.c.l.b16 %v256
      %v632 = vunpack.c.l.b16 %v257
      %v633 = vunpack.c.l.b16 %v258
      %v634 = vunpack.c.l.b16 %v259
      %v635 = vunpack.c.l.b16 %v260
      %v636 = vunpack.c.l.b16 %v261
      %v637 = vunpack.c.l.b16 %v262
      %v638 = vunpack.c.l.b16 %v263
      %v639 = vunpack.c.l.b16 %v264
      %v640 = vunpack.c.l.b16 %v265
      %v641 = vunpack.c.l.b16 %v266
      %v642 = vunpack.c.l.b16 %v267
      %v643 = vunpack.c.l.b16 %v268
      %v644 = vunpack.c.l.b16 %v269
      %v645 = vunpack.c.l.b16 %v270
      %v646 = vunpack.c.l.b16 %v271
      %v647 = vunpack.c.l.b16 %v272
      %v648 = vunpack.c.l.b16 %v273
      %v649 = vunpack.c.l.b16 %v274
      %v650 = vunpack.c.l.b16 %v275
      %v651 = vunpack.c.l.b16 %v276
      %v652 = vunpack.c.l.b16 %v277
      %v653 = vunpack.c.l.b16 %v278
      %v654 = vunpack.c.l.b16 %v279
      %v655 = vunpack.c.l.b16 %v280
      %v656 = vunpack.c.l.b16 %v281
      %v657 = vunpack.c.l.b16 %v282
      %v658 = vunpack.c.l.b16 %v283
      %v659 = vunpack.c.l.b16 %v284
      %v660 = vunpack.c.l.b16 %v285
      %v661 = vunpack.c.l.b16 %v286
      %v662 = vunpack.c.l.b16 %v287
      %v663 = vunpack.c.l.b16 %v288
      %v664 = vunpack.c.l.b16 %v289
      %v665 = vunpack.c.l.b16 %v290
      %v666 = vunpack.c.l.b16 %v291
      %v667 = vunpack.c.l.b16 %v292
      %v668 = vunpack.c.l.b16 %v293
      %v669 = vunpack.c.l.b16 %v294
      %v670 = vunpack.c.l.b16 %v295
      %v671 = vunpack.c.l.b16 %v296
      %v672 = vunpack.c.l.b16 %v297
      %v673 = vunpack.c.l.b16 %v298
      %v674 = vunpack.c.l.b16 %v299
      %v675 = vunpack.c.l.b16 %v300
      %v676 = vunpack.c.l.b16 %v301
      %v677 = vunpack.c.l.b16 %v302
      %v678 = vunpack.c.l.b16 %v303
      %v679 = vunpack.c.l.b16 %v304
      %v680 = vunpack.c.l.b16 %v305
      %v681 = vunpack.c.l.b16 %v306
      %v682 = vunpack.c.l.b16 %v307
      %v683 = vunpack.c.l.b16 %v308
      %v684 = vunpack.c.l.b16 %v309
      %v685 = vunpack.c.l.b16 %v310
      %v686 = vunpack.c.l.b16 %v311
      %v687 = vunpack.c.l.b16 %v312
      %v688 = vunpack.c.l.b16 %v313
      %v689 = vunpack.c.l.b16 %v314
      %v690 = vunpack.c.l.b16 %v315
      %v691 = vunpack.c.l.b16 %v316
      %v692 = vunpack.c.l.b16 %v317
      %v693 = vunpack.c.l.b16 %v318
      %v694 = vunpack.c.l.b16 %v319
      %v695 = vunpack.c.l.b16 %v320
      %v696 = vunpack.c.l.b16 %v321
      %v697 = vunpack.c.l.b16 %v322
      %v698 = vunpack.c.l.b16 %v323
      %v699 = vunpack.c.l.b16 %v324
      %v700 = vunpack.c.l.b16 %v325
      %v701 = vunpack.c.l.b16 %v326
      %v702 = vunpack.c.l.b16 %v327
      %v703 = vunpack.c.l.b16 %v328
      %v704 = vunpack.c.l.b16 %v329
      %v705 = vunpack.c.l.b16 %v330
      %v706 = vunpack.c.l.b16 %v331
      %v707 = vunpack.c.l.b16 %v332
      %v708 = vpack.c.b16 %v629, %v628
      %v709 = vpack.c.b16 %v631, %v630
      %v710 = vpack.c.b16 %v633, %v632
      %v711 = vpack.c.b16 %v635, %v634
      %v712 = vpack.c.b16 %v637, %v636
      %v713 = vpack.c.b16 %v639, %v638
      %v714 = vpack.c.b16 %v641, %v640
      %v715 = vpack.c.b16 %v643, %v642
      %v716 = vpack.c.b16 %v645, %v644
      %v717 = vpack.c.b16 %v647, %v646
      %v718 = vpack.c.b16 %v649, %v648
      %v719 = vpack.c.b16 %v651, %v650
      %v720 = vpack.c.b16 %v653, %v652
      %v721 = vpack.c.b16 %v655, %v654
      %v722 = vpack.c.b16 %v657, %v656
      %v723 = vpack.c.b16 %v659, %v658
      %v724 = vpack.c.b16 %v661, %v660
      %v725 = vpack.c.b16 %v663, %v662
      %v726 = vpack.c.b16 %v665, %v664
      %v727 = vpack.c.b16 %v667, %v666
      %v728 = vpack.c.b16 %v669, %v668
      %v729 = vpack.c.b16 %v671, %v670
      %v730 = vpack.c.b16 %v673, %v672
      %v731 = vpack.c.b16 %v675, %v674
      %v732 = vpack.c.b16 %v677, %v676
      %v733 = vpack.c.b16 %v679, %v678
      %v734 = vpack.c.b16 %v681, %v680
      %v735 = vpack.c.b16 %v683, %v682
      %v736 = vpack.c.b16 %v685, %v684
      %v737 = vpack.c.b16 %v687, %v686
      %v738 = vpack.c.b16 %v689, %v688
      %v739 = vpack.c.b16 %v691, %v690
      %v740 = vpack.c.b16 %v693, %v692
      %v741 = vpack.c.b16 %v695, %v694
      %v742 = vpack.c.b16 %v697, %v696
      %v743 = vpack.c.b16 %v699, %v698
      %v744 = vpack.c.b16 %v701, %v700
      %v745 = vpack.c.b16 %v703, %v702
      %v746 = vpack.c.b16 %v705, %v704
      %v747 = vpack.c.b16 %v707, %v706
      %788 = vmatprep.subr.bf16.mxu0 0
      %789 = vmatpush1.bf16.msra.mxu0 %v708
      %790 = vmatprep.subr.bf16.mxu0 0
      %791 = vmatpush1.bf16.msra.mxu0 %v709
      %792 = vmatprep.subr.bf16.mxu0 0
      %793 = vmatpush1.bf16.msra.mxu0 %v710
      %794 = vmatprep.subr.bf16.mxu0 0
      %795 = vmatpush1.bf16.msra.mxu0 %v711
      %796 = vmatprep.subr.bf16.mxu0 0
      %797 = vmatpush1.bf16.msra.mxu0 %v712
      %798 = vmatprep.subr.bf16.mxu0 0
      %799 = vmatpush1.bf16.msra.mxu0 %v713
      %800 = vmatprep.subr.bf16.mxu0 0
      %801 = vmatpush1.bf16.msra.mxu0 %v714
      %802 = vmatprep.subr.bf16.mxu0 0
      %803 = vmatpush1.bf16.msra.mxu0 %v715
      %804 = vmatprep.subr.bf16.mxu0 0
      %805 = vmatpush1.bf16.msra.mxu0 %v716
      %806 = vmatprep.subr.bf16.mxu0 0
      %807 = vmatpush1.bf16.msra.mxu0 %v717
      %808 = vmatprep.subr.bf16.mxu0 0
      %809 = vmatpush1.bf16.msra.mxu0 %v718
      %810 = vmatprep.subr.bf16.mxu0 0
      %811 = vmatpush1.bf16.msra.mxu0 %v719
      %812 = vmatprep.subr.bf16.mxu0 0
      %813 = vmatpush1.bf16.msra.mxu0 %v720
      %814 = vmatprep.subr.bf16.mxu0 0
      %815 = vmatpush1.bf16.msra.mxu0 %v721
      %816 = vmatprep.subr.bf16.mxu0 0
      %817 = vmatpush1.bf16.msra.mxu0 %v722
      %818 = vmatprep.subr.bf16.mxu0 0
      %819 = vmatpush1.bf16.msra.mxu0 %v723
      %820 = vmatprep.mubr.bf16.mxu0 %v469
      %821 = vmatmul.mubr.bf16.gmra.mrb[0].mxu0 %v468
      %v822 = vpop.f32.mrb[0].mxu0
      %v823 = vadd.f32 %v338, %v822
      %v824 = vpop.f32.mrb[0].mxu0
      %v825 = vpop.f32.mrb[0].mxu0
      %v826 = vadd.f32 %v338, %v825
      %v827 = vpop.f32.mrb[0].mxu0
      %828 = vmatprep.mubr.bf16.mxu0 %v474
      %829 = vmatmul.mubr.bf16.gmra.mrb[0].mxu0 %v473
      %v830 = vpop.f32.mrb[0].mxu0
      %v831 = vadd.f32 %v338, %v830
      %v832 = vpop.f32.mrb[0].mxu0
      %v833 = vpop.f32.mrb[0].mxu0
      %v834 = vadd.f32 %v338, %v833
      %v835 = vpop.f32.mrb[0].mxu0
      %836 = vmatprep.mubr.bf16.mxu0 %v479
      %837 = vmatmul.mubr.bf16.gmra.mrb[0].mxu0 %v478
      %v838 = vpop.f32.mrb[0].mxu0
      %v839 = vadd.f32 %v338, %v838
      %v840 = vpop.f32.mrb[0].mxu0
      %v841 = vpop.f32.mrb[0].mxu0
      %v842 = vadd.f32 %v338, %v841
      %v843 = vpop.f32.mrb[0].mxu0
      %844 = vmatprep.mubr.bf16.mxu0 %v484
      %845 = vmatmul.mubr.bf16.gmra.mrb[0].mxu0 %v483
      %v846 = vpop.f32.mrb[0].mxu0
      %v847 = vadd.f32 %v338, %v846
      %v848 = vpop.f32.mrb[0].mxu0
      %v849 = vpop.f32.mrb[0].mxu0
      %v850 = vadd.f32 %v338, %v849
      %v851 = vpop.f32.mrb[0].mxu0
      %852 = vmatprep.mubr.bf16.mxu0 %v489
      %853 = vmatmul.mubr.bf16.gmra.mrb[0].mxu0 %v488
      %v854 = vpop.f32.mrb[0].mxu0
      %v855 = vadd.f32 %v338, %v854
      %v856 = vpop.f32.mrb[0].mxu0
      %v857 = vpop.f32.mrb[0].mxu0
      %v858 = vadd.f32 %v338, %v857
      %v859 = vpop.f32.mrb[0].mxu0
      %860 = vmatprep.mubr.bf16.mxu0 %v494
      %861 = vmatmul.mubr.bf16.gmra.mrb[0].mxu0 %v493
      %v862 = vpop.f32.mrb[0].mxu0
      %v863 = vadd.f32 %v338, %v862
      %v864 = vpop.f32.mrb[0].mxu0
      %v865 = vpop.f32.mrb[0].mxu0
      %v866 = vadd.f32 %v338, %v865
      %v867 = vpop.f32.mrb[0].mxu0
      %868 = vmatprep.mubr.bf16.mxu0 %v499
      %869 = vmatmul.mubr.bf16.gmra.mrb[0].mxu0 %v498
      %v870 = vpop.f32.mrb[0].mxu0
      %v871 = vadd.f32 %v338, %v870
      %v872 = vpop.f32.mrb[0].mxu0
      %v873 = vpop.f32.mrb[0].mxu0
      %v874 = vadd.f32 %v338, %v873
      %v875 = vpop.f32.mrb[0].mxu0
      %876 = vmatprep.mubr.bf16.mxu0 %v504
      %877 = vmatmul.mubr.bf16.gmra.mrb[0].mxu0 %v503
      %v878 = vpop.f32.mrb[0].mxu0
      %v879 = vadd.f32 %v338, %v878
      %v880 = vpop.f32.mrb[0].mxu0
      %v881 = vpop.f32.mrb[0].mxu0
      %v882 = vadd.f32 %v338, %v881
      %v883 = vpop.f32.mrb[0].mxu0
      %884 = vdwg.mxu0
      %885 = vmatprep.subr.bf16.mxu0 0
      %886 = vmatpush1.bf16.msra.mxu0 %v724
      %887 = vmatprep.subr.bf16.mxu0 0
      %888 = vmatpush1.bf16.msra.mxu0 %v725
      %889 = vmatprep.subr.bf16.mxu0 0
      %890 = vmatpush1.bf16.msra.mxu0 %v726
      %891 = vmatprep.subr.bf16.mxu0 0
      %892 = vmatpush1.bf16.msra.mxu0 %v727
      %893 = vmatprep.subr.bf16.mxu0 0
      %894 = vmatpush1.bf16.msra.mxu0 %v728
      %895 = vmatprep.subr.bf16.mxu0 0
      %896 = vmatpush1.bf16.msra.mxu0 %v729
      %897 = vmatprep.subr.bf16.mxu0 0
      %898 = vmatpush1.bf16.msra.mxu0 %v730
      %899 = vmatprep.subr.bf16.mxu0 0
      %900 = vmatpush1.bf16.msra.mxu0 %v731
      %901 = vmatprep.subr.bf16.mxu0 0
      %902 = vmatpush1.bf16.msra.mxu0 %v732
      %903 = vmatprep.subr.bf16.mxu0 0
      %904 = vmatpush1.bf16.msra.mxu0 %v733
      %905 = vmatprep.subr.bf16.mxu0 0
      %906 = vmatpush1.bf16.msra.mxu0 %v734
      %907 = vmatprep.subr.bf16.mxu0 0
      %908 = vmatpush1.bf16.msra.mxu0 %v735
      %909 = vmatprep.subr.bf16.mxu0 0
      %910 = vmatpush1.bf16.msra.mxu0 %v736
      %911 = vmatprep.subr.bf16.mxu0 0
      %912 = vmatpush1.bf16.msra.mxu0 %v737
      %913 = vmatprep.subr.bf16.mxu0 0
      %914 = vmatpush1.bf16.msra.mxu0 %v738
      %915 = vmatprep.subr.bf16.mxu0 0
      %916 = vmatpush1.bf16.msra.mxu0 %v739
      %917 = vmatprep.mubr.bf16.mxu0 %v471
      %918 = vmatmul.mubr.bf16.gmra.mrb[0].mxu0 %v470
      %v919 = vpop.f32.mrb[0].mxu0
      %v920 = vadd.f32 %v823, %v919
      %v921 = vpop.f32.mrb[0].mxu0
      %v922 = vpop.f32.mrb[0].mxu0
      %v923 = vadd.f32 %v826, %v922
      %v924 = vpop.f32.mrb[0].mxu0
      %925 = vmatprep.mubr.bf16.mxu0 %v476
      %926 = vmatmul.mubr.bf16.gmra.mrb[0].mxu0 %v475
      %v927 = vpop.f32.mrb[0].mxu0
      %v928 = vadd.f32 %v831, %v927
      %v929 = vpop.f32.mrb[0].mxu0
      %v930 = vpop.f32.mrb[0].mxu0
      %v931 = vadd.f32 %v834, %v930
      %v932 = vpop.f32.mrb[0].mxu0
      %933 = vmatprep.mubr.bf16.mxu0 %v481
      %934 = vmatmul.mubr.bf16.gmra.mrb[0].mxu0 %v480
      %v935 = vpop.f32.mrb[0].mxu0
      %v936 = vadd.f32 %v839, %v935
      %v937 = vpop.f32.mrb[0].mxu0
      %v938 = vpop.f32.mrb[0].mxu0
      %v939 = vadd.f32 %v842, %v938
      %v940 = vpop.f32.mrb[0].mxu0
      %941 = vmatprep.mubr.bf16.mxu0 %v486
      %942 = vmatmul.mubr.bf16.gmra.mrb[0].mxu0 %v485
      %v943 = vpop.f32.mrb[0].mxu0
      %v944 = vadd.f32 %v847, %v943
      %v945 = vpop.f32.mrb[0].mxu0
      %v946 = vpop.f32.mrb[0].mxu0
      %v947 = vadd.f32 %v850, %v946
      %v948 = vpop.f32.mrb[0].mxu0
      %949 = vmatprep.mubr.bf16.mxu0 %v491
      %950 = vmatmul.mubr.bf16.gmra.mrb[0].mxu0 %v490
      %v951 = vpop.f32.mrb[0].mxu0
      %v952 = vadd.f32 %v855, %v951
      %v953 = vpop.f32.mrb[0].mxu0
      %v954 = vpop.f32.mrb[0].mxu0
      %v955 = vadd.f32 %v858, %v954
      %v956 = vpop.f32.mrb[0].mxu0
      %957 = vmatprep.mubr.bf16.mxu0 %v496
      %958 = vmatmul.mubr.bf16.gmra.mrb[0].mxu0 %v495
      %v959 = vpop.f32.mrb[0].mxu0
      %v960 = vadd.f32 %v863, %v959
      %v961 = vpop.f32.mrb[0].mxu0
      %v962 = vpop.f32.mrb[0].mxu0
      %v963 = vadd.f32 %v866, %v962
      %v964 = vpop.f32.mrb[0].mxu0
      %965 = vmatprep.mubr.bf16.mxu0 %v501
      %966 = vmatmul.mubr.bf16.gmra.mrb[0].mxu0 %v500
      %v967 = vpop.f32.mrb[0].mxu0
      %v968 = vadd.f32 %v871, %v967
      %v969 = vpop.f32.mrb[0].mxu0
      %v970 = vpop.f32.mrb[0].mxu0
      %v971 = vadd.f32 %v874, %v970
      %v972 = vpop.f32.mrb[0].mxu0
      %973 = vmatprep.mubr.bf16.mxu0 %v506
      %974 = vmatmul.mubr.bf16.gmra.mrb[0].mxu0 %v505
      %v975 = vpop.f32.mrb[0].mxu0
      %v976 = vadd.f32 %v879, %v975
      %v977 = vpop.f32.mrb[0].mxu0
      %v978 = vpop.f32.mrb[0].mxu0
      %v979 = vadd.f32 %v882, %v978
      %v980 = vpop.f32.mrb[0].mxu0
      %981 = vdwg.mxu0
      %982 = vmatprep.subr.bf16.mxu0 0
      %983 = vmatpush1.bf16.msra.mxu0 %v740
      %984 = vmatprep.subr.bf16.mxu0 0
      %985 = vmatpush1.bf16.msra.mxu0 %v741
      %986 = vmatprep.subr.bf16.mxu0 0
      %987 = vmatpush1.bf16.msra.mxu0 %v742
      %988 = vmatprep.subr.bf16.mxu0 0
      %989 = vmatpush1.bf16.msra.mxu0 %v743
      %990 = vmatprep.subr.bf16.mxu0 0
      %991 = vmatpush1.bf16.msra.mxu0 %v744
      %992 = vmatprep.subr.bf16.mxu0 0
      %993 = vmatpush1.bf16.msra.mxu0 %v745
      %994 = vmatprep.subr.bf16.mxu0 0
      %995 = vmatpush1.bf16.msra.mxu0 %v746
      %996 = vmatprep.subr.bf16.mxu0 0
      %997 = vmatpush1.bf16.msra.mxu0 %v747
      %998 = vmatprep.subr.bf16.mxu0 0
      %999 = vmatpush1.bf16.msra.mxu0 0
      %1000 = vmatprep.subr.bf16.mxu0 0
      %1001 = vmatpush1.bf16.msra.mxu0 0
      %1002 = vmatprep.subr.bf16.mxu0 0
      %1003 = vmatpush1.bf16.msra.mxu0 0
      %1004 = vmatprep.subr.bf16.mxu0 0
      %1005 = vmatpush1.bf16.msra.mxu0 0
      %1006 = vmatprep.subr.bf16.mxu0 0
      %1007 = vmatpush1.bf16.msra.mxu0 0
      %1008 = vmatprep.subr.bf16.mxu0 0
      %1009 = vmatpush1.bf16.msra.mxu0 0
      %1010 = vmatprep.subr.bf16.mxu0 0
      %1011 = vmatpush1.bf16.msra.mxu0 0
      %1012 = vmatprep.subr.bf16.mxu0 0
      %1013 = vmatpush1.bf16.msra.mxu0 0
      %1014 = vmatprep.mubr.bf16.mxu0 0
      %1015 = vmatmul.mubr.bf16.gmra.mrb[0].mxu0 %v472
      %v1016 = vpop.f32.mrb[0].mxu0
      %v1017 = vadd.f32 %v920, %v1016
      %v1018 = vpop.f32.mrb[0].mxu0
      %v1019 = vpop.f32.mrb[0].mxu0
      %v1020 = vadd.f32 %v923, %v1019
      %v1021 = vpop.f32.mrb[0].mxu0
      %1022 = vmatprep.mubr.bf16.mxu0 0
      %1023 = vmatmul.mubr.bf16.gmra.mrb[0].mxu0 %v477
      %v1024 = vpop.f32.mrb[0].mxu0
      %v1025 = vadd.f32 %v928, %v1024
      %v1026 = vpop.f32.mrb[0].mxu0
      %v1027 = vpop.f32.mrb[0].mxu0
      %v1028 = vadd.f32 %v931, %v1027
      %v1029 = vpop.f32.mrb[0].mxu0
      %1030 = vmatprep.mubr.bf16.mxu0 0
      %1031 = vmatmul.mubr.bf16.gmra.mrb[0].mxu0 %v482
      %v1032 = vpop.f32.mrb[0].mxu0
      %v1033 = vadd.f32 %v936, %v1032
      %v1034 = vpop.f32.mrb[0].mxu0
      %v1035 = vpop.f32.mrb[0].mxu0
      %v1036 = vadd.f32 %v939, %v1035
      %v1037 = vpop.f32.mrb[0].mxu0
      %1038 = vmatprep.mubr.bf16.mxu0 0
      %1039 = vmatmul.mubr.bf16.gmra.mrb[0].mxu0 %v487
      %v1040 = vpop.f32.mrb[0].mxu0
      %v1041 = vadd.f32 %v944, %v1040
      %v1042 = vpop.f32.mrb[0].mxu0
      %v1043 = vpop.f32.mrb[0].mxu0
      %v1044 = vadd.f32 %v947, %v1043
      %v1045 = vpop.f32.mrb[0].mxu0
      %1046 = vmatprep.mubr.bf16.mxu0 0
      %1047 = vmatmul.mubr.bf16.gmra.mrb[0].mxu0 %v492
      %v1048 = vpop.f32.mrb[0].mxu0
      %v1049 = vadd.f32 %v952, %v1048
      %v1050 = vpop.f32.mrb[0].mxu0
      %v1051 = vpop.f32.mrb[0].mxu0
      %v1052 = vadd.f32 %v955, %v1051
      %v1053 = vpop.f32.mrb[0].mxu0
      %1054 = vmatprep.mubr.bf16.mxu0 0
      %1055 = vmatmul.mubr.bf16.gmra.mrb[0].mxu0 %v497
      %v1056 = vpop.f32.mrb[0].mxu0
      %v1057 = vadd.f32 %v960, %v1056
      %v1058 = vpop.f32.mrb[0].mxu0
      %v1059 = vpop.f32.mrb[0].mxu0
      %v1060 = vadd.f32 %v963, %v1059
      %v1061 = vpop.f32.mrb[0].mxu0
      %1062 = vmatprep.mubr.bf16.mxu0 0
      %1063 = vmatmul.mubr.bf16.gmra.mrb[0].mxu0 %v502
      %v1064 = vpop.f32.mrb[0].mxu0
      %v1065 = vadd.f32 %v968, %v1064
      %v1066 = vpop.f32.mrb[0].mxu0
      %v1067 = vpop.f32.mrb[0].mxu0
      %v1068 = vadd.f32 %v971, %v1067
      %v1069 = vpop.f32.mrb[0].mxu0
      %1070 = vmatprep.mubr.bf16.mxu0 0
      %1071 = vmatmul.mubr.bf16.gmra.mrb[0].mxu0 %v507
      %v1072 = vpop.f32.mrb[0].mxu0
      %v1073 = vadd.f32 %v976, %v1072
      %v1074 = vpop.f32.mrb[0].mxu0
      %v1075 = vpop.f32.mrb[0].mxu0
      %v1076 = vadd.f32 %v979, %v1075
      %v1077 = vpop.f32.mrb[0].mxu0
      %1078 = vdwg.mxu0
      %v1079 = vmax.f32 %v1017, 0.0
      %v1080 = vmax.f32 %v1020, 0.0
      %v1081 = vmax.f32 %v1025, 0.0
      %v1082 = vmax.f32 %v1028, 0.0
      %v1083 = vmax.f32 %v1033, 0.0
      %v1084 = vmax.f32 %v1036, 0.0
      %v1085 = vmax.f32 %v1041, 0.0
      %v1086 = vmax.f32 %v1044, 0.0
      %v1087 = vmax.f32 %v1049, 0.0
      %v1088 = vmax.f32 %v1052, 0.0
      %v1089 = vmax.f32 %v1057, 0.0
      %v1090 = vmax.f32 %v1060, 0.0
      %v1091 = vmax.f32 %v1065, 0.0
      %v1092 = vmax.f32 %v1068, 0.0
      %v1093 = vmax.f32 %v1073, 0.0
      %v1094 = vmax.f32 %v1076, 0.0
      %v1095 = vpack.c.bf16 %v1080, %v1079
      %v1096 = vpack.c.bf16 %v1082, %v1081
      %v1097 = vpack.c.bf16 %v1084, %v1083
      %v1098 = vpack.c.bf16 %v1086, %v1085
      %v1099 = vpack.c.bf16 %v1088, %v1087
      %v1100 = vpack.c.bf16 %v1090, %v1089
      %v1101 = vpack.c.bf16 %v1092, %v1091
      %v1102 = vpack.c.bf16 %v1094, %v1093
      %v1103 = vld [vmem:[%s3] sm:$0xf]
      %v1104 = vld [vmem:[%s3 + $0x4] sm:$0xf]
      %v1105 = vld [vmem:[%s3 + $0x8] sm:$0xf]
      %v1106 = vld [vmem:[%s3 + $0xc] sm:$0xf]
      %v1107 = vld [vmem:[%s3 + $0x10] sm:$0xf]
      %v1108 = vld [vmem:[%s3 + $0x14] sm:$0xf]
      %v1109 = vld [vmem:[%s3 + $0x18] sm:$0xf]
      %v1110 = vld [vmem:[%s3 + $0x1c] sm:$0xf]
      %v1111 = vld [vmem:[%s3 + $0x20] sm:$0xf]
      %v1112 = vld [vmem:[%s3 + $0x24] sm:$0xf]
      %v1113 = vld [vmem:[%s3 + $0x28] sm:$0xf]
      %v1114 = vld [vmem:[%s3 + $0x2c] sm:$0xf]
      %v1115 = vld [vmem:[%s3 + $0x30] sm:$0xf]
      %v1116 = vld [vmem:[%s3 + $0x34] sm:$0xf]
      %v1117 = vld [vmem:[%s3 + $0x38] sm:$0xf]
      %v1118 = vld [vmem:[%s3 + $0x3c] sm:$0xf]
      %v1135 = vunpack.c.l.b16 %v1103
      %v1136 = vunpack.c.l.b16 %v1104
      %v1137 = vunpack.c.l.b16 %v1105
      %v1138 = vunpack.c.l.b16 %v1106
      %v1139 = vunpack.c.l.b16 %v1107
      %v1140 = vunpack.c.l.b16 %v1108
      %v1141 = vunpack.c.l.b16 %v1109
      %v1142 = vunpack.c.l.b16 %v1110
      %v1143 = vunpack.c.l.b16 %v1111
      %v1144 = vunpack.c.l.b16 %v1112
      %v1145 = vunpack.c.l.b16 %v1113
      %v1146 = vunpack.c.l.b16 %v1114
      %v1147 = vunpack.c.l.b16 %v1115
      %v1148 = vunpack.c.l.b16 %v1116
      %v1149 = vunpack.c.l.b16 %v1117
      %v1150 = vunpack.c.l.b16 %v1118
      %v1151 = vpack.c.b16 %v1136, %v1135
      %v1152 = vpack.c.b16 %v1138, %v1137
      %v1153 = vpack.c.b16 %v1140, %v1139
      %v1154 = vpack.c.b16 %v1142, %v1141
      %v1155 = vpack.c.b16 %v1144, %v1143
      %v1156 = vpack.c.b16 %v1146, %v1145
      %v1157 = vpack.c.b16 %v1148, %v1147
      %v1158 = vpack.c.b16 %v1150, %v1149
      %1167 = vmatprep.subr.bf16.mxu0 0
      %1168 = vmatpush1.bf16.msra.mxu0 %v1151
      %1169 = vmatprep.subr.bf16.mxu0 0
      %1170 = vmatpush1.bf16.msra.mxu0 %v1152
      %1171 = vmatprep.subr.bf16.mxu0 0
      %1172 = vmatpush1.bf16.msra.mxu0 %v1153
      %1173 = vmatprep.subr.bf16.mxu0 0
      %1174 = vmatpush1.bf16.msra.mxu0 %v1154
      %1175 = vmatprep.subr.bf16.mxu0 0
      %1176 = vmatpush1.bf16.msra.mxu0 %v1155
      %1177 = vmatprep.subr.bf16.mxu0 0
      %1178 = vmatpush1.bf16.msra.mxu0 %v1156
      %1179 = vmatprep.subr.bf16.mxu0 0
      %1180 = vmatpush1.bf16.msra.mxu0 %v1157
      %1181 = vmatprep.subr.bf16.mxu0 0
      %1182 = vmatpush1.bf16.msra.mxu0 %v1158
      %1183 = vmatprep.subr.bf16.mxu0 0
      %1184 = vmatpush1.bf16.msra.mxu0 0
      %1185 = vmatprep.subr.bf16.mxu0 0
      %1186 = vmatpush1.bf16.msra.mxu0 0
      %1187 = vmatprep.subr.bf16.mxu0 0
      %1188 = vmatpush1.bf16.msra.mxu0 0
      %1189 = vmatprep.subr.bf16.mxu0 0
      %1190 = vmatpush1.bf16.msra.mxu0 0
      %1191 = vmatprep.subr.bf16.mxu0 0
      %1192 = vmatpush1.bf16.msra.mxu0 0
      %1193 = vmatprep.subr.bf16.mxu0 0
      %1194 = vmatpush1.bf16.msra.mxu0 0
      %1195 = vmatprep.subr.bf16.mxu0 0
      %1196 = vmatpush1.bf16.msra.mxu0 0
      %1197 = vmatprep.subr.bf16.mxu0 0
      %1198 = vmatpush1.bf16.msra.mxu0 0
      %1199 = vmatprep.mubr.bf16.mxu0 0
      %1200 = vmatmul.mubr.bf16.gmra.mrb[0].mxu0 %v1095
      %v1201 = vpop.f32.mrb[0].mxu0
      %v1202 = vadd.f32 0.0, %v1201
      %v1203 = vpop.f32.mrb[0].mxu0
      %v1204 = vpop.f32.mrb[0].mxu0
      %v1205 = vadd.f32 0.0, %v1204
      %v1206 = vpop.f32.mrb[0].mxu0
      %1207 = vmatprep.mubr.bf16.mxu0 0
      %1208 = vmatmul.mubr.bf16.gmra.mrb[0].mxu0 %v1096
      %v1209 = vpop.f32.mrb[0].mxu0
      %v1210 = vadd.f32 0.0, %v1209
      %v1211 = vpop.f32.mrb[0].mxu0
      %v1212 = vpop.f32.mrb[0].mxu0
      %v1213 = vadd.f32 0.0, %v1212
      %v1214 = vpop.f32.mrb[0].mxu0
      %1215 = vmatprep.mubr.bf16.mxu0 0
      %1216 = vmatmul.mubr.bf16.gmra.mrb[0].mxu0 %v1097
      %v1217 = vpop.f32.mrb[0].mxu0
      %v1218 = vadd.f32 0.0, %v1217
      %v1219 = vpop.f32.mrb[0].mxu0
      %v1220 = vpop.f32.mrb[0].mxu0
      %v1221 = vadd.f32 0.0, %v1220
      %v1222 = vpop.f32.mrb[0].mxu0
      %1223 = vmatprep.mubr.bf16.mxu0 0
      %1224 = vmatmul.mubr.bf16.gmra.mrb[0].mxu0 %v1098
      %v1225 = vpop.f32.mrb[0].mxu0
      %v1226 = vadd.f32 0.0, %v1225
      %v1227 = vpop.f32.mrb[0].mxu0
      %v1228 = vpop.f32.mrb[0].mxu0
      %v1229 = vadd.f32 0.0, %v1228
      %v1230 = vpop.f32.mrb[0].mxu0
      %1231 = vmatprep.mubr.bf16.mxu0 0
      %1232 = vmatmul.mubr.bf16.gmra.mrb[0].mxu0 %v1099
      %v1233 = vpop.f32.mrb[0].mxu0
      %v1234 = vadd.f32 0.0, %v1233
      %v1235 = vpop.f32.mrb[0].mxu0
      %v1236 = vpop.f32.mrb[0].mxu0
      %v1237 = vadd.f32 0.0, %v1236
      %v1238 = vpop.f32.mrb[0].mxu0
      %1239 = vmatprep.mubr.bf16.mxu0 0
      %1240 = vmatmul.mubr.bf16.gmra.mrb[0].mxu0 %v1100
      %v1241 = vpop.f32.mrb[0].mxu0
      %v1242 = vadd.f32 0.0, %v1241
      %v1243 = vpop.f32.mrb[0].mxu0
      %v1244 = vpop.f32.mrb[0].mxu0
      %v1245 = vadd.f32 0.0, %v1244
      %v1246 = vpop.f32.mrb[0].mxu0
      %1247 = vmatprep.mubr.bf16.mxu0 0
      %1248 = vmatmul.mubr.bf16.gmra.mrb[0].mxu0 %v1101
      %v1249 = vpop.f32.mrb[0].mxu0
      %v1250 = vadd.f32 0.0, %v1249
      %v1251 = vpop.f32.mrb[0].mxu0
      %v1252 = vpop.f32.mrb[0].mxu0
      %v1253 = vadd.f32 0.0, %v1252
      %v1254 = vpop.f32.mrb[0].mxu0
      %1255 = vmatprep.mubr.bf16.mxu0 0
      %1256 = vmatmul.mubr.bf16.gmra.mrb[0].mxu0 %v1102
      %v1257 = vpop.f32.mrb[0].mxu0
      %v1258 = vadd.f32 0.0, %v1257
      %v1259 = vpop.f32.mrb[0].mxu0
      %v1260 = vpop.f32.mrb[0].mxu0
      %v1261 = vadd.f32 0.0, %v1260
      %v1262 = vpop.f32.mrb[0].mxu0
      %1263 = vdwg.mxu0
      %v1264 = vpack.c.bf16 %v1205, %v1202
      %v1265 = vpack.c.bf16 %v1213, %v1210
      %v1266 = vpack.c.bf16 %v1221, %v1218
      %v1267 = vpack.c.bf16 %v1229, %v1226
      %v1268 = vpack.c.bf16 %v1237, %v1234
      %v1269 = vpack.c.bf16 %v1245, %v1242
      %v1270 = vpack.c.bf16 %v1253, %v1250
      %v1271 = vpack.c.bf16 %v1261, %v1258
      %v1280 = vunpack.c.l.b16 %v1264
      %v1281 = vunpack.c.h.b16 %v1264
      %v1282 = vunpack.c.l.b16 %v1265
      %v1283 = vunpack.c.h.b16 %v1265
      %v1284 = vunpack.c.l.b16 %v1266
      %v1285 = vunpack.c.h.b16 %v1266
      %v1286 = vunpack.c.l.b16 %v1267
      %v1287 = vunpack.c.h.b16 %v1267
      %v1288 = vunpack.c.l.b16 %v1268
      %v1289 = vunpack.c.h.b16 %v1268
      %v1290 = vunpack.c.l.b16 %v1269
      %v1291 = vunpack.c.h.b16 %v1269
      %v1292 = vunpack.c.l.b16 %v1270
      %v1293 = vunpack.c.h.b16 %v1270
      %v1294 = vunpack.c.l.b16 %v1271
      %v1295 = vunpack.c.h.b16 %v1271
      %v1296 = vpack.c.b16 %v1280, %v1280
      %v1297 = vpack.c.b16 %v1281, %v1281
      %v1298 = vpack.c.b16 %v1282, %v1282
      %v1299 = vpack.c.b16 %v1283, %v1283
      %v1300 = vpack.c.b16 %v1284, %v1284
      %v1301 = vpack.c.b16 %v1285, %v1285
      %v1302 = vpack.c.b16 %v1286, %v1286
      %v1303 = vpack.c.b16 %v1287, %v1287
      %v1304 = vpack.c.b16 %v1288, %v1288
      %v1305 = vpack.c.b16 %v1289, %v1289
      %v1306 = vpack.c.b16 %v1290, %v1290
      %v1307 = vpack.c.b16 %v1291, %v1291
      %v1308 = vpack.c.b16 %v1292, %v1292
      %v1309 = vpack.c.b16 %v1293, %v1293
      %v1310 = vpack.c.b16 %v1294, %v1294
      %v1311 = vpack.c.b16 %v1295, %v1295
      %1328 = vst [vmem:[%s202] sm:$0xf] %v1296
      %1329 = vst [vmem:[%s202 + $0x4] sm:$0xf] %v1297
      %1330 = vst [vmem:[%s202 + $0x8] sm:$0xf] %v1298
      %1331 = vst [vmem:[%s202 + $0xc] sm:$0xf] %v1299
      %1332 = vst [vmem:[%s202 + $0x10] sm:$0xf] %v1300
      %1333 = vst [vmem:[%s202 + $0x14] sm:$0xf] %v1301
      %1334 = vst [vmem:[%s202 + $0x18] sm:$0xf] %v1302
      %1335 = vst [vmem:[%s202 + $0x1c] sm:$0xf] %v1303
      %1336 = vst [vmem:[%s202 + $0x20] sm:$0xf] %v1304
      %1337 = vst [vmem:[%s202 + $0x24] sm:$0xf] %v1305
      %1338 = vst [vmem:[%s202 + $0x28] sm:$0xf] %v1306
      %1339 = vst [vmem:[%s202 + $0x2c] sm:$0xf] %v1307
      %1340 = vst [vmem:[%s202 + $0x30] sm:$0xf] %v1308
      %1341 = vst [vmem:[%s202 + $0x34] sm:$0xf] %v1309
      %1342 = vst [vmem:[%s202 + $0x38] sm:$0xf] %v1310
      %1343 = vst [vmem:[%s202 + $0x3c] sm:$0xf] %v1311
      %s1344 = smul.u32 16, %s15
      %p1345 = scmp.lt.s32.totalorder %s1344, 47
      %s1346 = scalar_select %p1345, %s1344, 47
      %s1347 = smul.addr %s1346, 4
      %s1348 = scalar_lea.vmem %s4, %s1347
      // Predicated region
      $region37: #{gcn_forward.4} parent=35 // pred_check
        %p1349 = pneg %p122
      $region38: #{gcn_forward.4} parent=35 // pred_check_branch
        %1351 = sbr.rel (%p1349) target = $region40
      $region39: #{gcn_forward.4} parent=35 // pred_region
        %s1352 = smul.u32 16, %s15
      $region40: #{gcn_forward.4} parent=35 // pred_fallthru
        _
    $region36: #{gcn_forward.4} parent=5 // pred_fallthru
      _
    %p1353 = scmp.le.s32.totalorder 2, %s10
    // Predicated region
    $region41: #{gcn_forward.4} parent=5 // pred_check
      %p1354 = pneg %p1353
    $region42: #{gcn_forward.4} parent=5 // pred_check_branch
      %1356 = sbr.rel (%p1354) target = $region44
    $region43: #{gcn_forward.4} parent=5 // pred_region
      %s1357 = ssub.s32 %s10, 2
      // Predicated region
      $region45: #{gcn_forward.4} parent=43 // pred_check
        %p1358 = pneg %p128
      $region46: #{gcn_forward.4} parent=43 // pred_check_branch
        %1360 = sbr.rel (%p1358) target = $region48
      $region47: #{gcn_forward.4} parent=43 // pred_region
        %s1361 = smul.u32 16, %s16
        %p1362 = scmp.lt.s32.totalorder %s1361, 47
        %s1363 = scalar_select %p1362, %s1361, 47
        %s1364 = smul.addr %s1363, 4
        %s1365 = scalar_lea.vmem %s4, %s1364
      $region48: #{gcn_forward.4} parent=43 // pred_fallthru
        _
    $region44: #{gcn_forward.4} parent=5 // pred_fallthru
      _
  $region6: #{gcn_forward.4} parent=0 // loop_footer
    %s14 = sadd.s32 1, %s10
  $region7: #{gcn_forward.4} parent=0 // loop_footer_branch
    %9 = sbr.rel target = $region3
  $region8: #{gcn_forward.4} parent=0 // loop_exit
    _

</llo_original>
